<compile_context>
chip_gen: v7x
topology: tpu7x:2x2x1
jax: 0.10.0
libtpu: 0.0.40
codegen_flags: <defaults>
</compile_context>

<pallas_src>
import functools
import math

import jax
import jax.numpy as jnp
from jax.experimental import pallas as pl
from jax.experimental.pallas import tpu as pltpu


def _round_up(x: int, m: int) -> int:
    return ((x + m - 1) // m) * m


def _coordconv_kernel(x_ref, wx_ref, cb_ref, o_ref, *, kh, kw, Wp, Lout):
    """One batch element: stride-1 conv as kh*kw shifted MXU matmuls.

    x_ref : (1, C, Lin)        zero-padded, row-major-flattened activation slab
    wx_ref: (kh*kw, Cout, C)   per-tap weight tiles for the activation channels
    cb_ref: (Cout, Lout)       precomputed coord-channel contribution + bias
    o_ref : (1, Cout, Lout)    lane-dense output slab
    """
    acc = cb_ref[...]                                   # coord conv term + bias
    for dy in range(kh):
        for dx in range(kw):
            t = dy * kw + dx                            # tap index
            s = dy * Wp + dx                            # constant lane shift
            acc = acc + jnp.dot(wx_ref[t], x_ref[0, :, pl.ds(s, Lout)],
                                preferred_element_type=jnp.float32)
    o_ref[0] = acc.astype(o_ref.dtype)


def coord_conv_forward(x, weight, bias, *, padding=1, with_r=False):
    """CoordConv forward: x (B,C,H,W) -> (B,Cout,Hout,Wout).  stride=1 only."""
    B, C, H, W = x.shape
    if H != W:
        # The original PyTorch AddCoords only concatenates consistently for square inputs.
        raise ValueError("CoordConv Pallas kernel requires square spatial dims (H == W)")
    Cout, Cin, kh, kw = weight.shape
    ncoord = 3 if with_r else 2
    assert Cin == C + ncoord, (Cin, C, ncoord)

    p = padding
    Hp, Wp = H + 2 * p, W + 2 * p
    Hout, Wout = Hp - kh + 1, Wp - kw + 1
    s_max = (kh - 1) * Wp + (kw - 1)

    Lout = _round_up(Hout * Wp, 128)         # lane-dense output slab
    Lin = _round_up(Lout + s_max, 128)       # input slab (covers every shifted slice)
    assert Lin >= Hp * Wp

    f32 = jnp.float32
    w = weight.astype(f32)

    # ---- activation: zero-pad spatially, flatten row-major, pad flat axis to Lin ----
    xp = jnp.pad(x.astype(f32), ((0, 0), (0, 0), (p, p), (p, p)))
    x_flat = xp.reshape(B, C, Hp * Wp)
    x_flat = jnp.pad(x_flat, ((0, 0), (0, 0), (0, Lin - Hp * Wp)))

    # ---- per-tap weight tiles for the activation channels ----
    wx_taps = jnp.transpose(w[:, :C], (2, 3, 0, 1)).reshape(kh * kw, Cout, C)

    # ---- batch-invariant coordinate-channel conv term, folded with the bias ----
    # PyTorch AddCoords (square input): xx = normalised column, yy = normalised row.
    cols = jnp.arange(W, dtype=f32)
    rows = jnp.arange(H, dtype=f32)
    xx = jnp.broadcast_to(2.0 * cols[None, :] / (W - 1) - 1.0, (H, W))
    yy = jnp.broadcast_to(2.0 * rows[:, None] / (H - 1) - 1.0, (H, W))
    coord_list = [xx, yy]
    if with_r:
        coord_list.append(jnp.sqrt(xx * xx + yy * yy))
    coords = jnp.stack(coord_list, axis=0)                       # (ncoord, H, W)
    coords = jnp.pad(coords, ((0, 0), (p, p), (p, p))).reshape(ncoord, Hp * Wp)
    coords = jnp.pad(coords, ((0, 0), (0, Lin - Hp * Wp)))       # (ncoord, Lin)

    wc_taps = jnp.transpose(w[:, C:], (2, 3, 0, 1)).reshape(kh * kw, Cout, ncoord)
    shifted = jnp.stack([coords[:, dy * Wp + dx: dy * Wp + dx + Lout]
                         for dy in range(kh) for dx in range(kw)], axis=0)
    coord_bias = jnp.einsum("toc,tcl->ol", wc_taps, shifted,
                            precision=jax.lax.Precision.HIGHEST)  # (Cout, Lout)
    coord_bias = coord_bias + bias.astype(f32)[:, None]

    kernel = functools.partial(_coordconv_kernel, kh=kh, kw=kw, Wp=Wp, Lout=Lout)

    out_flat = pl.pallas_call(
        kernel,
        out_shape=jax.ShapeDtypeStruct((B, Cout, Lout), f32),
        grid_spec=pltpu.PrefetchScalarGridSpec(
            num_scalar_prefetch=0,
            grid=(B,),
            in_specs=[
                pl.BlockSpec((1, C, Lin), lambda b: (b, 0, 0)),
                pl.BlockSpec((kh * kw, Cout, C), lambda b: (0, 0, 0)),
                pl.BlockSpec((Cout, Lout), lambda b: (0, 0)),      # resident across grid
            ],
            out_specs=pl.BlockSpec((1, Cout, Lout), lambda b: (b, 0, 0)),
        ),
        compiler_params=pltpu.CompilerParams(
            dimension_semantics=("parallel",),
        ),
    )(x_flat, wx_taps, coord_bias)

    # Drop the Wp-W junk columns and un-flatten (free layout glue).
    out = out_flat[:, :, :Hout * Wp].reshape(B, Cout, Hout, Wp)[:, :, :, :Wout]
    return out


class CoordConv:
    """JAX/Pallas equivalent of the PyTorch CoordConv module (AddCoords + Conv2d)."""

    def __init__(self, input_nc, output_nc, with_r=False, use_spect=False,
                 kernel_size=3, stride=1, padding=1, key=None):
        if use_spect:
            # TODO(synk): SpectralNorm weight reparameterisation not implemented.
            raise NotImplementedError("use_spect=True is not supported")
        if stride != 1:
            # TODO(synk): only stride=1 is supported by the Pallas conv kernel.
            raise NotImplementedError("stride != 1 is not supported")
        self.with_r = with_r
        self.padding = padding
        cin = input_nc + (3 if with_r else 2)
        key = jax.random.PRNGKey(0) if key is None else key
        kw_, kb_ = jax.random.split(key)
        fan_in = cin * kernel_size * kernel_size
        bound = 1.0 / math.sqrt(fan_in)
        self.weight = jax.random.uniform(
            kw_, (output_nc, cin, kernel_size, kernel_size), jnp.float32, -bound, bound)
        self.bias = jax.random.uniform(kb_, (output_nc,), jnp.float32, -bound, bound)

    def __call__(self, x):
        return coord_conv_forward(x, self.weight, self.bias,
                                  padding=self.padding, with_r=self.with_r)


def _reference(x, weight, bias, padding, with_r):
    """Pure-JAX reference matching the PyTorch module (square inputs)."""
    B, C, H, W = x.shape
    cols = jnp.arange(W, dtype=jnp.float32)
    rows = jnp.arange(H, dtype=jnp.float32)
    xx = jnp.broadcast_to((2.0 * cols / (W - 1) - 1.0)[None, :], (H, W))
    yy = jnp.broadcast_to((2.0 * rows / (H - 1) - 1.0)[:, None], (H, W))
    chans = [x,
             jnp.broadcast_to(xx, (B, 1, H, W)),
             jnp.broadcast_to(yy, (B, 1, H, W))]
    if with_r:
        rr = jnp.sqrt(xx ** 2 + yy ** 2)
        chans.append(jnp.broadcast_to(rr, (B, 1, H, W)))
    aug = jnp.concatenate(chans, axis=1)
    out = jax.lax.conv_general_dilated(
        aug, weight, window_strides=(1, 1),
        padding=[(padding, padding), (padding, padding)],
        dimension_numbers=("NCHW", "OIHW", "NCHW"),
        precision=jax.lax.Precision.HIGHEST)
    return out + bias[None, :, None, None]


if __name__ == "__main__":
    key = jax.random.PRNGKey(0)
    kx, km1, km2 = jax.random.split(key, 3)

    B, C, H, W = 2, 4, 16, 16
    out_nc = 8
    x = jax.random.normal(kx, (B, C, H, W), dtype=jnp.float32)

    for with_r, mkey in ((False, km1), (True, km2)):
        module = CoordConv(C, out_nc, with_r=with_r, use_spect=False,
                           kernel_size=3, stride=1, padding=1, key=mkey)
        out = module(x)
        out = jax.block_until_ready(out)

        ref = _reference(x, module.weight, module.bias, 1, with_r)
        assert out.shape == (B, out_nc, H, W), out.shape
        assert out.dtype == jnp.float32
        err = float(jnp.max(jnp.abs(out - ref)))
        assert jnp.allclose(out, ref, atol=2e-2, rtol=2e-2), f"max abs err {err}"

    print("KERNEL_OK")
</pallas_src>

<mosaic_0001>
module attributes {stable_mosaic.version = 11 : i64} {
  func.func @_coordconv_kernel(%arg0: i32, %arg1: memref<1x4x512xf32, #tpu.memory_space<vmem>>, %arg2: memref<9x8x4xf32, #tpu.memory_space<vmem>>, %arg3: memref<8x384xf32, #tpu.memory_space<vmem>>, %arg4: memref<1x8x384xf32, #tpu.memory_space<vmem>>) attributes {dimension_semantics = [#tpu.dimension_semantics<parallel>], iteration_bounds = array<i64: 2>, scalar_prefetch = 0 : i64, scratch_operands = 0 : i64, tpu.core_type = #tpu.core_type<tc>, window_params = [{transform_indices = @transform_0, window_bounds = array<i64: 1, 4, 512>}, {pipeline_mode = #tpu.pipeline_mode<synchronous>, transform_indices = @transform_1, window_bounds = array<i64: 9, 8, 4>}, {pipeline_mode = #tpu.pipeline_mode<synchronous>, transform_indices = @transform_2, window_bounds = array<i64: 8, 384>}, {transform_indices = @transform_3, window_bounds = array<i64: 1, 8, 384>}]} {
    %c0 = arith.constant 0 : index
    %c0_0 = arith.constant 0 : index
    %0 = vector.load %arg3[%c0, %c0_0] : memref<8x384xf32, #tpu.memory_space<vmem>>, vector<8x384xf32>
    %c0_1 = arith.constant 0 : index
    %c0_2 = arith.constant 0 : index
    %c0_3 = arith.constant 0 : index
    %1 = vector.load %arg2[%c0_1, %c0_2, %c0_3] : memref<9x8x4xf32, #tpu.memory_space<vmem>>, vector<1x8x4xf32>
    %2 = vector.shape_cast %1 : vector<1x8x4xf32> to vector<8x4xf32>
    %c0_4 = arith.constant 0 : index
    %c0_5 = arith.constant 0 : index
    %c0_6 = arith.constant 0 : index
    %3 = vector.load %arg1[%c0_4, %c0_5, %c0_6] : memref<1x4x512xf32, #tpu.memory_space<vmem>>, vector<1x4x384xf32>
    %4 = vector.shape_cast %3 : vector<1x4x384xf32> to vector<4x384xf32>
    %cst = arith.constant dense<0.000000e+00> : vector<8x384xf32>
    %5 = tpu.matmul %2, %4, %cst {dimension_numbers = #tpu.dot_dimension_numbers<[1], [0], [0], [1], [0, 0, 1, 1], [], []>} : vector<8x4xf32>, vector<4x384xf32>, vector<8x384xf32> -> vector<8x384xf32>
    %6 = arith.addf %0, %5 : vector<8x384xf32>
    %c1 = arith.constant 1 : index
    %c0_7 = arith.constant 0 : index
    %c0_8 = arith.constant 0 : index
    %7 = vector.load %arg2[%c1, %c0_7, %c0_8] : memref<9x8x4xf32, #tpu.memory_space<vmem>>, vector<1x8x4xf32>
    %8 = vector.shape_cast %7 : vector<1x8x4xf32> to vector<8x4xf32>
    %c0_9 = arith.constant 0 : index
    %c0_10 = arith.constant 0 : index
    %c1_11 = arith.constant 1 : index
    %9 = vector.load %arg1[%c0_9, %c0_10, %c1_11] : memref<1x4x512xf32, #tpu.memory_space<vmem>>, vector<1x4x384xf32>
    %10 = vector.shape_cast %9 : vector<1x4x384xf32> to vector<4x384xf32>
    %cst_12 = arith.constant dense<0.000000e+00> : vector<8x384xf32>
    %11 = tpu.matmul %8, %10, %cst_12 {dimension_numbers = #tpu.dot_dimension_numbers<[1], [0], [0], [1], [0, 0, 1, 1], [], []>} : vector<8x4xf32>, vector<4x384xf32>, vector<8x384xf32> -> vector<8x384xf32>
    %12 = arith.addf %6, %11 : vector<8x384xf32>
    %c2 = arith.constant 2 : index
    %c0_13 = arith.constant 0 : index
    %c0_14 = arith.constant 0 : index
    %13 = vector.load %arg2[%c2, %c0_13, %c0_14] : memref<9x8x4xf32, #tpu.memory_space<vmem>>, vector<1x8x4xf32>
    %14 = vector.shape_cast %13 : vector<1x8x4xf32> to vector<8x4xf32>
    %c0_15 = arith.constant 0 : index
    %c0_16 = arith.constant 0 : index
    %c2_17 = arith.constant 2 : index
    %15 = vector.load %arg1[%c0_15, %c0_16, %c2_17] : memref<1x4x512xf32, #tpu.memory_space<vmem>>, vector<1x4x384xf32>
    %16 = vector.shape_cast %15 : vector<1x4x384xf32> to vector<4x384xf32>
    %cst_18 = arith.constant dense<0.000000e+00> : vector<8x384xf32>
    %17 = tpu.matmul %14, %16, %cst_18 {dimension_numbers = #tpu.dot_dimension_numbers<[1], [0], [0], [1], [0, 0, 1, 1], [], []>} : vector<8x4xf32>, vector<4x384xf32>, vector<8x384xf32> -> vector<8x384xf32>
    %18 = arith.addf %12, %17 : vector<8x384xf32>
    %c3 = arith.constant 3 : index
    %c0_19 = arith.constant 0 : index
    %c0_20 = arith.constant 0 : index
    %19 = vector.load %arg2[%c3, %c0_19, %c0_20] : memref<9x8x4xf32, #tpu.memory_space<vmem>>, vector<1x8x4xf32>
    %20 = vector.shape_cast %19 : vector<1x8x4xf32> to vector<8x4xf32>
    %c0_21 = arith.constant 0 : index
    %c0_22 = arith.constant 0 : index
    %c18 = arith.constant 18 : index
    %21 = vector.load %arg1[%c0_21, %c0_22, %c18] : memref<1x4x512xf32, #tpu.memory_space<vmem>>, vector<1x4x384xf32>
    %22 = vector.shape_cast %21 : vector<1x4x384xf32> to vector<4x384xf32>
    %cst_23 = arith.constant dense<0.000000e+00> : vector<8x384xf32>
    %23 = tpu.matmul %20, %22, %cst_23 {dimension_numbers = #tpu.dot_dimension_numbers<[1], [0], [0], [1], [0, 0, 1, 1], [], []>} : vector<8x4xf32>, vector<4x384xf32>, vector<8x384xf32> -> vector<8x384xf32>
    %24 = arith.addf %18, %23 : vector<8x384xf32>
    %c4 = arith.constant 4 : index
    %c0_24 = arith.constant 0 : index
    %c0_25 = arith.constant 0 : index
    %25 = vector.load %arg2[%c4, %c0_24, %c0_25] : memref<9x8x4xf32, #tpu.memory_space<vmem>>, vector<1x8x4xf32>
    %26 = vector.shape_cast %25 : vector<1x8x4xf32> to vector<8x4xf32>
    %c0_26 = arith.constant 0 : index
    %c0_27 = arith.constant 0 : index
    %c19 = arith.constant 19 : index
    %27 = vector.load %arg1[%c0_26, %c0_27, %c19] : memref<1x4x512xf32, #tpu.memory_space<vmem>>, vector<1x4x384xf32>
    %28 = vector.shape_cast %27 : vector<1x4x384xf32> to vector<4x384xf32>
    %cst_28 = arith.constant dense<0.000000e+00> : vector<8x384xf32>
    %29 = tpu.matmul %26, %28, %cst_28 {dimension_numbers = #tpu.dot_dimension_numbers<[1], [0], [0], [1], [0, 0, 1, 1], [], []>} : vector<8x4xf32>, vector<4x384xf32>, vector<8x384xf32> -> vector<8x384xf32>
    %30 = arith.addf %24, %29 : vector<8x384xf32>
    %c5 = arith.constant 5 : index
    %c0_29 = arith.constant 0 : index
    %c0_30 = arith.constant 0 : index
    %31 = vector.load %arg2[%c5, %c0_29, %c0_30] : memref<9x8x4xf32, #tpu.memory_space<vmem>>, vector<1x8x4xf32>
    %32 = vector.shape_cast %31 : vector<1x8x4xf32> to vector<8x4xf32>
    %c0_31 = arith.constant 0 : index
    %c0_32 = arith.constant 0 : index
    %c20 = arith.constant 20 : index
    %33 = vector.load %arg1[%c0_31, %c0_32, %c20] : memref<1x4x512xf32, #tpu.memory_space<vmem>>, vector<1x4x384xf32>
    %34 = vector.shape_cast %33 : vector<1x4x384xf32> to vector<4x384xf32>
    %cst_33 = arith.constant dense<0.000000e+00> : vector<8x384xf32>
    %35 = tpu.matmul %32, %34, %cst_33 {dimension_numbers = #tpu.dot_dimension_numbers<[1], [0], [0], [1], [0, 0, 1, 1], [], []>} : vector<8x4xf32>, vector<4x384xf32>, vector<8x384xf32> -> vector<8x384xf32>
    %36 = arith.addf %30, %35 : vector<8x384xf32>
    %c6 = arith.constant 6 : index
    %c0_34 = arith.constant 0 : index
    %c0_35 = arith.constant 0 : index
    %37 = vector.load %arg2[%c6, %c0_34, %c0_35] : memref<9x8x4xf32, #tpu.memory_space<vmem>>, vector<1x8x4xf32>
    %38 = vector.shape_cast %37 : vector<1x8x4xf32> to vector<8x4xf32>
    %c0_36 = arith.constant 0 : index
    %c0_37 = arith.constant 0 : index
    %c36 = arith.constant 36 : index
    %39 = vector.load %arg1[%c0_36, %c0_37, %c36] : memref<1x4x512xf32, #tpu.memory_space<vmem>>, vector<1x4x384xf32>
    %40 = vector.shape_cast %39 : vector<1x4x384xf32> to vector<4x384xf32>
    %cst_38 = arith.constant dense<0.000000e+00> : vector<8x384xf32>
    %41 = tpu.matmul %38, %40, %cst_38 {dimension_numbers = #tpu.dot_dimension_numbers<[1], [0], [0], [1], [0, 0, 1, 1], [], []>} : vector<8x4xf32>, vector<4x384xf32>, vector<8x384xf32> -> vector<8x384xf32>
    %42 = arith.addf %36, %41 : vector<8x384xf32>
    %c7 = arith.constant 7 : index
    %c0_39 = arith.constant 0 : index
    %c0_40 = arith.constant 0 : index
    %43 = vector.load %arg2[%c7, %c0_39, %c0_40] : memref<9x8x4xf32, #tpu.memory_space<vmem>>, vector<1x8x4xf32>
    %44 = vector.shape_cast %43 : vector<1x8x4xf32> to vector<8x4xf32>
    %c0_41 = arith.constant 0 : index
    %c0_42 = arith.constant 0 : index
    %c37 = arith.constant 37 : index
    %45 = vector.load %arg1[%c0_41, %c0_42, %c37] : memref<1x4x512xf32, #tpu.memory_space<vmem>>, vector<1x4x384xf32>
    %46 = vector.shape_cast %45 : vector<1x4x384xf32> to vector<4x384xf32>
    %cst_43 = arith.constant dense<0.000000e+00> : vector<8x384xf32>
    %47 = tpu.matmul %44, %46, %cst_43 {dimension_numbers = #tpu.dot_dimension_numbers<[1], [0], [0], [1], [0, 0, 1, 1], [], []>} : vector<8x4xf32>, vector<4x384xf32>, vector<8x384xf32> -> vector<8x384xf32>
    %48 = arith.addf %42, %47 : vector<8x384xf32>
    %c8 = arith.constant 8 : index
    %c0_44 = arith.constant 0 : index
    %c0_45 = arith.constant 0 : index
    %49 = vector.load %arg2[%c8, %c0_44, %c0_45] : memref<9x8x4xf32, #tpu.memory_space<vmem>>, vector<1x8x4xf32>
    %50 = vector.shape_cast %49 : vector<1x8x4xf32> to vector<8x4xf32>
    %c0_46 = arith.constant 0 : index
    %c0_47 = arith.constant 0 : index
    %c38 = arith.constant 38 : index
    %51 = vector.load %arg1[%c0_46, %c0_47, %c38] : memref<1x4x512xf32, #tpu.memory_space<vmem>>, vector<1x4x384xf32>
    %52 = vector.shape_cast %51 : vector<1x4x384xf32> to vector<4x384xf32>
    %cst_48 = arith.constant dense<0.000000e+00> : vector<8x384xf32>
    %53 = tpu.matmul %50, %52, %cst_48 {dimension_numbers = #tpu.dot_dimension_numbers<[1], [0], [0], [1], [0, 0, 1, 1], [], []>} : vector<8x4xf32>, vector<4x384xf32>, vector<8x384xf32> -> vector<8x384xf32>
    %54 = arith.addf %48, %53 : vector<8x384xf32>
    %c0_49 = arith.constant 0 : index
    %c0_50 = arith.constant 0 : index
    %c0_51 = arith.constant 0 : index
    %55 = vector.load %arg4[%c0_49, %c0_50, %c0_51] : memref<1x8x384xf32, #tpu.memory_space<vmem>>, vector<1x8x384xf32>
    %56 = vector.shape_cast %55 : vector<1x8x384xf32> to vector<8x384xf32>
    %57 = vector.shape_cast %54 : vector<8x384xf32> to vector<1x8x384xf32>
    tpu.vector_store %arg4[%c0_49, %c0_50, %c0_51], %57 {strides = array<i32>} : memref<1x8x384xf32, #tpu.memory_space<vmem>>, vector<1x8x384xf32>,
    return
  }
  func.func @transform_0(%arg0: i32) -> (i32, i32, i32) {
    %c0_i32 = arith.constant 0 : i32
    %c0_i32_0 = arith.constant 0 : i32
    %c0_i32_1 = arith.constant 0 : i32
    return %arg0, %c0_i32, %c0_i32_0 : i32, i32, i32
  }
  func.func @transform_1(%arg0: i32) -> (i32, i32, i32) {
    %c0_i32 = arith.constant 0 : i32
    %c0_i32_0 = arith.constant 0 : i32
    %c0_i32_1 = arith.constant 0 : i32
    %c0_i32_2 = arith.constant 0 : i32
    return %c0_i32, %c0_i32_0, %c0_i32_1 : i32, i32, i32
  }
  func.func @transform_2(%arg0: i32) -> (i32, i32) {
    %c0_i32 = arith.constant 0 : i32
    %c0_i32_0 = arith.constant 0 : i32
    %c0_i32_1 = arith.constant 0 : i32
    return %c0_i32, %c0_i32_0 : i32, i32
  }
  func.func @transform_3(%arg0: i32) -> (i32, i32, i32) {
    %c0_i32 = arith.constant 0 : i32
    %c0_i32_0 = arith.constant 0 : i32
    %c0_i32_1 = arith.constant 0 : i32
    return %arg0, %c0_i32, %c0_i32_0 : i32, i32, i32
  }
}

</mosaic_0001>

<llo_original>
// kernel: tpu_custom_call.1
$region0: #{tpu_custom_call.1}
  #allocation0 [shape = 'u32[]', space=smem, size = 0x4, offset = 0x4, fixed_abs, tag = 'smem constant byte address 0x4 - core index']
  #allocation1 [shape = 'u32[144,128]{1,0:T(1,128)}', space=vmem, size = 0x12000, scoped, tag = 'internal scratch']
  %s0 = inlined_call_operand.vmem [shape: f32[2,4,512], index: 0, kind: input, shape index: {}]
  %s1 = inlined_call_operand.vmem [shape: f32[9,8,4], index: 1, kind: input, shape index: {}]
  %s2 = inlined_call_operand.vmem [shape: f32[8,384], index: 2, kind: input, shape index: {}]
  %s3 = inlined_call_operand.hbm [shape: f32[2,8,384], index: 3, kind: output, shape index: {}]
  %s4 = sld [smem:[#allocation0]]
  $region45: #{tpu_custom_call.1} parent=0
    _
  %s6 = ssub.s32 1, %s4
  %s7 = scalar_select 0, %s6, %s4
  $region1: #{tpu_custom_call.1} parent=0
    #allocation2 [shape = 'u8[24576]{0}', space=vmem, size = 0x6000, scoped, tag = 'output window, operand 0']
    #allocation3 [shape = 's32[2]{0}', space=sflag, size = 0x8, scoped, tag = 'scoped memory for tpu_custom_call.1']
    %8 = vsyncpa [#allocation3], 0
    %s9 = scalar_lea.sflag [#allocation3], 1
    %10 = vsyncpa %s9, 0
    loop: start=0, step=1, limit=4
    $region2: #{tpu_custom_call.1} parent=1 // loop_pre_header
      _
    $region3: #{tpu_custom_call.1} parent=1 // loop_header
      %s12 = sphi 0, %s16
      %p13 = scmp.ge.s32.totalorder %s12, 4
      %s22 = sphi 0, %s24
      %s25 = sphi 0, %s22
      %s26 = sphi 0, %s25
      %s42 = sphi 0, %s26
      %s46 = sphi 0, %s46
      %s48 = sphi 0, %s46
      %s49 = sphi 0, %s48
      %s63 = sphi 0, %s49
      %s67 = sphi 0, %s67
      %s69 = sphi 0, %s67
      %s70 = sphi 0, %s69
      %s84 = sphi 0, %s70
      %s90 = sphi 0, %s92
      %s93 = sphi 0, %s90
      %s94 = sphi 0, %s93
      %s110 = sphi 0, %s94
    $region4: #{tpu_custom_call.1} parent=1 // loop_header_branch
      %15 = sbr.rel (%p13) target = $region8
    $region5: #{tpu_custom_call.1} parent=1 // loop_body
      %s17 = ssub.s32 %s12, 1
      %s18 = ssub.s32 %s12, 2
      %s19 = sadd.s32 %s12, 1
      %s20 = ssub.s32 %s12, %s19
      %p21 = scmp.eq.s32.totalorder %s20, 0
      %s23 = sadd.s32 %s22, 1
      %s24 = scalar_select %p21, %s22, %s23
      %p27 = pneg %p21
      %p28 = scmp.eq.s32.totalorder %s12, 1
      %p29 = por %p27, %p28
      %p30 = scmp.ne.s32.totalorder %s22, %s25
      %p31 = scmp.eq.s32.totalorder %s12, 0
      %p32 = por %p30, %p31
      %p33 = scmp.ne.s32.totalorder %s22, %s25
      %p34 = scmp.eq.s32.totalorder %s17, 1
      %p35 = por %p33, %p34
      %p36 = scmp.ne.s32.totalorder %s25, %s26
      %p37 = scmp.eq.s32.totalorder %s17, 0
      %p38 = por %p36, %p37
      %p39 = scmp.ne.s32.totalorder %s25, %s26
      %p40 = scmp.eq.s32.totalorder %s18, 1
      %p41 = por %p39, %p40
      %p43 = scmp.ne.s32.totalorder %s26, %s42
      %p44 = scmp.eq.s32.totalorder %s18, 0
      %p45 = por %p43, %p44
      %s47 = sadd.s32 %s46, 1
      %p50 = scmp.eq.s32.totalorder %s12, 1
      %p51 = scmp.ne.s32.totalorder %s46, %s48
      %p52 = scmp.eq.s32.totalorder %s12, 0
      %p53 = por %p51, %p52
      %p54 = scmp.ne.s32.totalorder %s46, %s48
      %p55 = scmp.eq.s32.totalorder %s17, 1
      %p56 = por %p54, %p55
      %p57 = scmp.ne.s32.totalorder %s48, %s49
      %p58 = scmp.eq.s32.totalorder %s17, 0
      %p59 = por %p57, %p58
      %p60 = scmp.ne.s32.totalorder %s48, %s49
      %p61 = scmp.eq.s32.totalorder %s18, 1
      %p62 = por %p60, %p61
      %p64 = scmp.ne.s32.totalorder %s49, %s63
      %p65 = scmp.eq.s32.totalorder %s18, 0
      %p66 = por %p64, %p65
      %s68 = sadd.s32 %s67, 1
      %p71 = scmp.eq.s32.totalorder %s12, 1
      %p72 = scmp.ne.s32.totalorder %s67, %s69
      %p73 = scmp.eq.s32.totalorder %s12, 0
      %p74 = por %p72, %p73
      %p75 = scmp.ne.s32.totalorder %s67, %s69
      %p76 = scmp.eq.s32.totalorder %s17, 1
      %p77 = por %p75, %p76
      %p78 = scmp.ne.s32.totalorder %s69, %s70
      %p79 = scmp.eq.s32.totalorder %s17, 0
      %p80 = por %p78, %p79
      %p81 = scmp.ne.s32.totalorder %s69, %s70
      %p82 = scmp.eq.s32.totalorder %s18, 1
      %p83 = por %p81, %p82
      %p85 = scmp.ne.s32.totalorder %s70, %s84
      %p86 = scmp.eq.s32.totalorder %s18, 0
      %p87 = por %p85, %p86
      %s88 = ssub.s32 %s12, %s19
      %p89 = scmp.eq.s32.totalorder %s88, 0
      %s91 = sadd.s32 %s90, 1
      %s92 = scalar_select %p89, %s90, %s91
      %p95 = pneg %p89
      %p96 = scmp.eq.s32.totalorder %s12, 1
      %p97 = por %p95, %p96
      %p98 = scmp.ne.s32.totalorder %s90, %s93
      %p99 = scmp.eq.s32.totalorder %s12, 0
      %p100 = por %p98, %p99
      %p101 = scmp.ne.s32.totalorder %s90, %s93
      %p102 = scmp.eq.s32.totalorder %s17, 1
      %p103 = por %p101, %p102
      %p104 = scmp.ne.s32.totalorder %s93, %s94
      %p105 = scmp.eq.s32.totalorder %s17, 0
      %p106 = por %p104, %p105
      %p107 = scmp.ne.s32.totalorder %s93, %s94
      %p108 = scmp.eq.s32.totalorder %s18, 1
      %p109 = por %p107, %p108
      %p111 = scmp.ne.s32.totalorder %s94, %s110
      %p112 = scmp.eq.s32.totalorder %s18, 0
      %p113 = por %p111, %p112
      %p114 = scmp.le.s32.totalorder 1, %s12
      %p115 = scmp.lt.s32.totalorder %s12, 3
      %p116 = pnand %p114, %p115
      %p117 = pneg %p116
      // Predicated region
      $region9: #{tpu_custom_call.1} parent=5 // pred_check
        _
      $region10: #{tpu_custom_call.1} parent=5 // pred_check_branch
        %119 = sbr.rel (%p116) target = $region12
      $region11: #{tpu_custom_call.1} parent=5 // pred_region
        %s120 = ssub.s32 %s12, 1
        // Predicated region
        $region13: #{tpu_custom_call.1} parent=11 // pred_check
          %p121 = pneg %p59
        $region14: #{tpu_custom_call.1} parent=11 // pred_check_branch
          %123 = sbr.rel (%p121) target = $region16
        $region15: #{tpu_custom_call.1} parent=11 // pred_region
          _
        $region16: #{tpu_custom_call.1} parent=11 // pred_fallthru
          _
        // Predicated region
        $region17: #{tpu_custom_call.1} parent=11 // pred_check
          %p124 = pneg %p80
        $region18: #{tpu_custom_call.1} parent=11 // pred_check_branch
          %126 = sbr.rel (%p124) target = $region20
        $region19: #{tpu_custom_call.1} parent=11 // pred_region
          _
        $region20: #{tpu_custom_call.1} parent=11 // pred_fallthru
          _
      $region12: #{tpu_custom_call.1} parent=5 // pred_fallthru
        _
      %p127 = scmp.lt.s32.totalorder %s12, 2
      // Predicated region
      $region21: #{tpu_custom_call.1} parent=5 // pred_check
        %p128 = pneg %p127
      $region22: #{tpu_custom_call.1} parent=5 // pred_check_branch
        %130 = sbr.rel (%p128) target = $region24
      $region23: #{tpu_custom_call.1} parent=5 // pred_region
        // Predicated region
        $region25: #{tpu_custom_call.1} parent=23 // pred_check
          %p131 = pneg %p32
        $region26: #{tpu_custom_call.1} parent=23 // pred_check_branch
          %133 = sbr.rel (%p131) target = $region28
        $region27: #{tpu_custom_call.1} parent=23 // pred_region
          %p134 = scmp.lt.s32.totalorder %s12, 1
          %s135 = scalar_select %p134, %s12, 1
          %s136 = smul.addr %s135, 4
          %s137 = smul.addr %s136, 4
          %s138 = scalar_lea.vmem %s0, %s137
        $region28: #{tpu_custom_call.1} parent=23 // pred_fallthru
          _
      $region24: #{tpu_custom_call.1} parent=5 // pred_fallthru
        _
      %p139 = scmp.le.s32.totalorder 1, %s12
      %p140 = scmp.lt.s32.totalorder %s12, 3
      %p141 = pnand %p139, %p140
      %p142 = pneg %p141
      // Predicated region
      $region29: #{tpu_custom_call.1} parent=5 // pred_check
        _
      $region30: #{tpu_custom_call.1} parent=5 // pred_check_branch
        %144 = sbr.rel (%p141) target = $region32
      $region31: #{tpu_custom_call.1} parent=5 // pred_region
        %s145 = ssub.s32 %s12, 1
        %p146 = scmp.lt.s32.totalorder %s17, 1
        %s147 = scalar_select %p146, %s17, 1
        %s148 = smul.addr %s147, 4
        %s149 = smul.addr %s148, 4
        %s150 = scalar_lea.vmem %s0, %s149
        %p151 = pneg %p38
        %p152 = pneg %p35
        %p153 = pneg %p59
        %p154 = pneg %p56
        %p155 = pneg %p80
        %p156 = pneg %p77
        %p157 = pneg %p106
        %p158 = pneg %p103
        %s159 = sand.u32 %s93, 1
        %s160 = scalar_lea.sflag [#allocation3], %s159
        %s161 = sand.u32 %s93, 1
        %s162 = smul.addr %s161, 24
        %s163 = scalar_lea.vmem [#allocation2], %s162
        %p164 = scmp.lt.s32.totalorder %s17, 1
        %s165 = scalar_select %p164, %s17, 1
        %s166 = smul.addr %s165, 4
        %s167 = smul.addr %s166, 4
        %s168 = scalar_lea.vmem %s0, %s167
        %v169 = vld [vmem:[%s2] sm:$0xff]
        %v170 = vld [vmem:[%s2 + $0x8] sm:$0xff]
        %v171 = vld [vmem:[%s2 + $0x10] sm:$0xff]
        %v172 = vld [vmem:[%s1] sm:$0xff]
        %v173 = vld [vmem:[%s168] sm:$0xff]
        %v174 = vld [vmem:[%s168 + $0x8] sm:$0xf]
        %v177 = vcombine.high %v173, %v173
        %vm178 = vcmask 31744
        %v180 = vsel %vm178, %v172, 0
        %vm182 = vcmask 1043456
        %v183 = vsel %vm182, %v173, 0
        %v185 = vsel %vm182, %v177, 0
        %v187 = vsel %vm182, %v174, 0
        %189 = vmatprep.subr.mxu0 %v185
        %190 = vmatpush1.msra.mxu0 %v183
        %191 = vmatprep.subr.mxu0 0.0
        %192 = vmatpush1.msra.mxu0 0.0
        %193 = vmatprep.subr.mxu0 0.0
        %194 = vmatpush1.msra.mxu0 0.0
        %195 = vmatprep.subr.mxu0 0.0
        %196 = vmatpush1.msra.mxu0 0.0
        %197 = vmatprep.subr.mxu0 0.0
        %198 = vmatpush1.msra.mxu0 0.0
        %199 = vmatprep.subr.mxu0 0.0
        %200 = vmatpush1.msra.mxu0 0.0
        %201 = vmatprep.subr.mxu0 0.0
        %202 = vmatpush1.msra.mxu0 0.0
        %203 = vmatprep.subr.mxu0 0.0
        %204 = vmatpush1.msra.mxu0 0.0
        %205 = vmatprep.subr.mxu0 0.0
        %206 = vmatpush1.msra.mxu0 0.0
        %207 = vmatprep.subr.mxu0 0.0
        %208 = vmatpush1.msra.mxu0 0.0
        %209 = vmatprep.subr.mxu0 0.0
        %210 = vmatpush1.msra.mxu0 0.0
        %211 = vmatprep.subr.mxu0 0.0
        %212 = vmatpush1.msra.mxu0 0.0
        %213 = vmatprep.subr.mxu0 0.0
        %214 = vmatpush1.msra.mxu0 0.0
        %215 = vmatprep.subr.mxu0 0.0
        %216 = vmatpush1.msra.mxu0 0.0
        %217 = vmatprep.subr.mxu0 0.0
        %218 = vmatpush1.msra.mxu0 0.0
        %219 = vmatprep.subr.mxu0 0.0
        %220 = vmatpush1.msra.mxu0 0.0
        %221 = vmatprep.subr.mxu0 0.0
        %222 = vmatpush1.msra.mxu0 0.0
        %223 = vmatprep.subr.mxu0 0.0
        %224 = vmatpush1.msra.mxu0 0.0
        %225 = vmatprep.subr.mxu0 0.0
        %226 = vmatpush1.msra.mxu0 0.0
        %227 = vmatprep.subr.mxu0 0.0
        %228 = vmatpush1.msra.mxu0 0.0
        %229 = vmatprep.subr.mxu0 0.0
        %230 = vmatpush1.msra.mxu0 0.0
        %231 = vmatprep.subr.mxu0 0.0
        %232 = vmatpush1.msra.mxu0 0.0
        %233 = vmatprep.subr.mxu0 0.0
        %234 = vmatpush1.msra.mxu0 0.0
        %235 = vmatprep.subr.mxu0 0.0
        %236 = vmatpush1.msra.mxu0 0.0
        %237 = vmatprep.subr.mxu0 0.0
        %238 = vmatpush1.msra.mxu0 0.0
        %239 = vmatprep.subr.mxu0 0.0
        %240 = vmatpush1.msra.mxu0 0.0
        %241 = vmatprep.subr.mxu0 0.0
        %242 = vmatpush1.msra.mxu0 0.0
        %243 = vmatprep.subr.mxu0 0.0
        %244 = vmatpush1.msra.mxu0 0.0
        %245 = vmatprep.subr.mxu0 0.0
        %246 = vmatpush1.msra.mxu0 0.0
        %247 = vmatprep.subr.mxu0 0.0
        %248 = vmatpush1.msra.mxu0 0.0
        %249 = vmatprep.subr.mxu0 0.0
        %250 = vmatpush1.msra.mxu0 0.0
        %251 = vmatprep.subr.mxu0 0.0
        %252 = vmatpush1.msra.mxu0 0.0
        %253 = vmatprep.mubr.f32.mxu0 0.0
        %254 = vmatmul.mubr.f32.gmra.mrb[0].mxu0 %v180
        %v255 = vpop.f32.mrb[0].mxu0
        %v256 = vadd.f32 0.0, %v255
        %v257 = vpop.f32.mrb[0].mxu0
        %v258 = vadd.f32 0.0, %v257
        %259 = vdwg.mxu0
        %260 = vmatprep.subr.mxu0 0.0
        %261 = vmatpush1.msra.mxu0 %v187
        %262 = vmatprep.subr.mxu0 0.0
        %263 = vmatpush1.msra.mxu0 0.0
        %264 = vmatprep.subr.mxu0 0.0
        %265 = vmatpush1.msra.mxu0 0.0
        %266 = vmatprep.subr.mxu0 0.0
        %267 = vmatpush1.msra.mxu0 0.0
        %268 = vmatprep.subr.mxu0 0.0
        %269 = vmatpush1.msra.mxu0 0.0
        %270 = vmatprep.subr.mxu0 0.0
        %271 = vmatpush1.msra.mxu0 0.0
        %272 = vmatprep.subr.mxu0 0.0
        %273 = vmatpush1.msra.mxu0 0.0
        %274 = vmatprep.subr.mxu0 0.0
        %275 = vmatpush1.msra.mxu0 0.0
        %276 = vmatprep.subr.mxu0 0.0
        %277 = vmatpush1.msra.mxu0 0.0
        %278 = vmatprep.subr.mxu0 0.0
        %279 = vmatpush1.msra.mxu0 0.0
        %280 = vmatprep.subr.mxu0 0.0
        %281 = vmatpush1.msra.mxu0 0.0
        %282 = vmatprep.subr.mxu0 0.0
        %283 = vmatpush1.msra.mxu0 0.0
        %284 = vmatprep.subr.mxu0 0.0
        %285 = vmatpush1.msra.mxu0 0.0
        %286 = vmatprep.subr.mxu0 0.0
        %287 = vmatpush1.msra.mxu0 0.0
        %288 = vmatprep.subr.mxu0 0.0
        %289 = vmatpush1.msra.mxu0 0.0
        %290 = vmatprep.subr.mxu0 0.0
        %291 = vmatpush1.msra.mxu0 0.0
        %292 = vmatprep.subr.mxu0 0.0
        %293 = vmatpush1.msra.mxu0 0.0
        %294 = vmatprep.subr.mxu0 0.0
        %295 = vmatpush1.msra.mxu0 0.0
        %296 = vmatprep.subr.mxu0 0.0
        %297 = vmatpush1.msra.mxu0 0.0
        %298 = vmatprep.subr.mxu0 0.0
        %299 = vmatpush1.msra.mxu0 0.0
        %300 = vmatprep.subr.mxu0 0.0
        %301 = vmatpush1.msra.mxu0 0.0
        %302 = vmatprep.subr.mxu0 0.0
        %303 = vmatpush1.msra.mxu0 0.0
        %304 = vmatprep.subr.mxu0 0.0
        %305 = vmatpush1.msra.mxu0 0.0
        %306 = vmatprep.subr.mxu0 0.0
        %307 = vmatpush1.msra.mxu0 0.0
        %308 = vmatprep.subr.mxu0 0.0
        %309 = vmatpush1.msra.mxu0 0.0
        %310 = vmatprep.subr.mxu0 0.0
        %311 = vmatpush1.msra.mxu0 0.0
        %312 = vmatprep.subr.mxu0 0.0
        %313 = vmatpush1.msra.mxu0 0.0
        %314 = vmatprep.subr.mxu0 0.0
        %315 = vmatpush1.msra.mxu0 0.0
        %316 = vmatprep.subr.mxu0 0.0
        %317 = vmatpush1.msra.mxu0 0.0
        %318 = vmatprep.subr.mxu0 0.0
        %319 = vmatpush1.msra.mxu0 0.0
        %320 = vmatprep.subr.mxu0 0.0
        %321 = vmatpush1.msra.mxu0 0.0
        %322 = vmatprep.subr.mxu0 0.0
        %323 = vmatpush1.msra.mxu0 0.0
        %324 = vmatprep.mubr.f32.mxu0 0.0
        %325 = vmatmul.mubr.f32.gmra.mrb[0].mxu0 %v180
        %v326 = vpop.f32.mrb[0].mxu0
        %v327 = vadd.f32 0.0, %v326
        %v328 = vpop.f32.mrb[0].mxu0
        %329 = vdwg.mxu0
        %v330 = vadd.f32 %v169, %v256
        %v331 = vadd.f32 %v170, %v258
        %v332 = vadd.f32 %v171, %v327
        %s333 = scalar_lea.vmem %s1, 8
        %v334 = vld [vmem:[%s333] sm:$0xff]
        %v335 = vld [vmem:[%s168] sm:$0xff]
        %v336 = vld [vmem:[%s168 + $0x8] sm:$0xff]
        %v339 = vcombine.high %v335, %v335
        %v340 = vcombine.high %v336, %v336
        %341 = vrot.lane.b32.xlu0 %v335, 127
        %v342 = vpop.permute.xlu0 %341
        %343 = vrot.lane.b32.xlu0 %v339, 127
        %v344 = vpop.permute.xlu0 %343
        %345 = vrot.lane.b32.xlu0 %v336, 127
        %v346 = vpop.permute.xlu0 %345
        %347 = vrot.lane.b32.xlu0 %v340, 127
        %v348 = vpop.permute.xlu0 %347
        %vm349 = vcmask 1039360
        %v350 = vsel %vm349, %v342, %v344
        %v351 = vsel %vm349, %v344, %v346
        %v352 = vsel %vm349, %v346, %v348
        %v354 = vsel %vm178, %v334, 0
        %v356 = vsel %vm182, %v350, 0
        %v358 = vsel %vm182, %v351, 0
        %v360 = vsel %vm182, %v352, 0
        %362 = vmatprep.subr.mxu0 %v358
        %363 = vmatpush1.msra.mxu0 %v356
        %364 = vmatprep.subr.mxu0 0.0
        %365 = vmatpush1.msra.mxu0 0.0
        %366 = vmatprep.subr.mxu0 0.0
        %367 = vmatpush1.msra.mxu0 0.0
        %368 = vmatprep.subr.mxu0 0.0
        %369 = vmatpush1.msra.mxu0 0.0
        %370 = vmatprep.subr.mxu0 0.0
        %371 = vmatpush1.msra.mxu0 0.0
        %372 = vmatprep.subr.mxu0 0.0
        %373 = vmatpush1.msra.mxu0 0.0
        %374 = vmatprep.subr.mxu0 0.0
        %375 = vmatpush1.msra.mxu0 0.0
        %376 = vmatprep.subr.mxu0 0.0
        %377 = vmatpush1.msra.mxu0 0.0
        %378 = vmatprep.subr.mxu0 0.0
        %379 = vmatpush1.msra.mxu0 0.0
        %380 = vmatprep.subr.mxu0 0.0
        %381 = vmatpush1.msra.mxu0 0.0
        %382 = vmatprep.subr.mxu0 0.0
        %383 = vmatpush1.msra.mxu0 0.0
        %384 = vmatprep.subr.mxu0 0.0
        %385 = vmatpush1.msra.mxu0 0.0
        %386 = vmatprep.subr.mxu0 0.0
        %387 = vmatpush1.msra.mxu0 0.0
        %388 = vmatprep.subr.mxu0 0.0
        %389 = vmatpush1.msra.mxu0 0.0
        %390 = vmatprep.subr.mxu0 0.0
        %391 = vmatpush1.msra.mxu0 0.0
        %392 = vmatprep.subr.mxu0 0.0
        %393 = vmatpush1.msra.mxu0 0.0
        %394 = vmatprep.subr.mxu0 0.0
        %395 = vmatpush1.msra.mxu0 0.0
        %396 = vmatprep.subr.mxu0 0.0
        %397 = vmatpush1.msra.mxu0 0.0
        %398 = vmatprep.subr.mxu0 0.0
        %399 = vmatpush1.msra.mxu0 0.0
        %400 = vmatprep.subr.mxu0 0.0
        %401 = vmatpush1.msra.mxu0 0.0
        %402 = vmatprep.subr.mxu0 0.0
        %403 = vmatpush1.msra.mxu0 0.0
        %404 = vmatprep.subr.mxu0 0.0
        %405 = vmatpush1.msra.mxu0 0.0
        %406 = vmatprep.subr.mxu0 0.0
        %407 = vmatpush1.msra.mxu0 0.0
        %408 = vmatprep.subr.mxu0 0.0
        %409 = vmatpush1.msra.mxu0 0.0
        %410 = vmatprep.subr.mxu0 0.0
        %411 = vmatpush1.msra.mxu0 0.0
        %412 = vmatprep.subr.mxu0 0.0
        %413 = vmatpush1.msra.mxu0 0.0
        %414 = vmatprep.subr.mxu0 0.0
        %415 = vmatpush1.msra.mxu0 0.0
        %416 = vmatprep.subr.mxu0 0.0
        %417 = vmatpush1.msra.mxu0 0.0
        %418 = vmatprep.subr.mxu0 0.0
        %419 = vmatpush1.msra.mxu0 0.0
        %420 = vmatprep.subr.mxu0 0.0
        %421 = vmatpush1.msra.mxu0 0.0
        %422 = vmatprep.subr.mxu0 0.0
        %423 = vmatpush1.msra.mxu0 0.0
        %424 = vmatprep.subr.mxu0 0.0
        %425 = vmatpush1.msra.mxu0 0.0
        %426 = vmatprep.mubr.f32.mxu0 0.0
        %427 = vmatmul.mubr.f32.gmra.mrb[0].mxu0 %v354
        %v428 = vpop.f32.mrb[0].mxu0
        %v429 = vadd.f32 0.0, %v428
        %v430 = vpop.f32.mrb[0].mxu0
        %v431 = vadd.f32 0.0, %v430
        %432 = vdwg.mxu0
        %433 = vmatprep.subr.mxu0 0.0
        %434 = vmatpush1.msra.mxu0 %v360
        %435 = vmatprep.subr.mxu0 0.0
        %436 = vmatpush1.msra.mxu0 0.0
        %437 = vmatprep.subr.mxu0 0.0
        %438 = vmatpush1.msra.mxu0 0.0
        %439 = vmatprep.subr.mxu0 0.0
        %440 = vmatpush1.msra.mxu0 0.0
        %441 = vmatprep.subr.mxu0 0.0
        %442 = vmatpush1.msra.mxu0 0.0
        %443 = vmatprep.subr.mxu0 0.0
        %444 = vmatpush1.msra.mxu0 0.0
        %445 = vmatprep.subr.mxu0 0.0
        %446 = vmatpush1.msra.mxu0 0.0
        %447 = vmatprep.subr.mxu0 0.0
        %448 = vmatpush1.msra.mxu0 0.0
        %449 = vmatprep.subr.mxu0 0.0
        %450 = vmatpush1.msra.mxu0 0.0
        %451 = vmatprep.subr.mxu0 0.0
        %452 = vmatpush1.msra.mxu0 0.0
        %453 = vmatprep.subr.mxu0 0.0
        %454 = vmatpush1.msra.mxu0 0.0
        %455 = vmatprep.subr.mxu0 0.0
        %456 = vmatpush1.msra.mxu0 0.0
        %457 = vmatprep.subr.mxu0 0.0
        %458 = vmatpush1.msra.mxu0 0.0
        %459 = vmatprep.subr.mxu0 0.0
        %460 = vmatpush1.msra.mxu0 0.0
        %461 = vmatprep.subr.mxu0 0.0
        %462 = vmatpush1.msra.mxu0 0.0
        %463 = vmatprep.subr.mxu0 0.0
        %464 = vmatpush1.msra.mxu0 0.0
        %465 = vmatprep.subr.mxu0 0.0
        %466 = vmatpush1.msra.mxu0 0.0
        %467 = vmatprep.subr.mxu0 0.0
        %468 = vmatpush1.msra.mxu0 0.0
        %469 = vmatprep.subr.mxu0 0.0
        %470 = vmatpush1.msra.mxu0 0.0
        %471 = vmatprep.subr.mxu0 0.0
        %472 = vmatpush1.msra.mxu0 0.0
        %473 = vmatprep.subr.mxu0 0.0
        %474 = vmatpush1.msra.mxu0 0.0
        %475 = vmatprep.subr.mxu0 0.0
        %476 = vmatpush1.msra.mxu0 0.0
        %477 = vmatprep.subr.mxu0 0.0
        %478 = vmatpush1.msra.mxu0 0.0
        %479 = vmatprep.subr.mxu0 0.0
        %480 = vmatpush1.msra.mxu0 0.0
        %481 = vmatprep.subr.mxu0 0.0
        %482 = vmatpush1.msra.mxu0 0.0
        %483 = vmatprep.subr.mxu0 0.0
        %484 = vmatpush1.msra.mxu0 0.0
        %485 = vmatprep.subr.mxu0 0.0
        %486 = vmatpush1.msra.mxu0 0.0
        %487 = vmatprep.subr.mxu0 0.0
        %488 = vmatpush1.msra.mxu0 0.0
        %489 = vmatprep.subr.mxu0 0.0
        %490 = vmatpush1.msra.mxu0 0.0
        %491 = vmatprep.subr.mxu0 0.0
        %492 = vmatpush1.msra.mxu0 0.0
        %493 = vmatprep.subr.mxu0 0.0
        %494 = vmatpush1.msra.mxu0 0.0
        %495 = vmatprep.subr.mxu0 0.0
        %496 = vmatpush1.msra.mxu0 0.0
        %497 = vmatprep.mubr.f32.mxu0 0.0
        %498 = vmatmul.mubr.f32.gmra.mrb[0].mxu0 %v354
        %v499 = vpop.f32.mrb[0].mxu0
        %v500 = vadd.f32 0.0, %v499
        %v501 = vpop.f32.mrb[0].mxu0
        %502 = vdwg.mxu0
        %v503 = vadd.f32 %v330, %v429
        %v504 = vadd.f32 %v331, %v431
        %v505 = vadd.f32 %v332, %v500
        %s506 = scalar_lea.vmem %s1, 16
        %v507 = vld [vmem:[%s506] sm:$0xff]
        %v508 = vld [vmem:[%s168] sm:$0xff]
        %v509 = vld [vmem:[%s168 + $0x8] sm:$0xff]
        %v512 = vcombine.high %v508, %v508
        %v513 = vcombine.high %v509, %v509
        %514 = vrot.lane.b32.xlu0 %v508, 126
        %v515 = vpop.permute.xlu0 %514
        %516 = vrot.lane.b32.xlu0 %v512, 126
        %v517 = vpop.permute.xlu0 %516
        %518 = vrot.lane.b32.xlu0 %v509, 126
        %v519 = vpop.permute.xlu0 %518
        %520 = vrot.lane.b32.xlu0 %v513, 126
        %v521 = vpop.permute.xlu0 %520
        %vm522 = vcmask 1031168
        %v523 = vsel %vm522, %v515, %v517
        %v524 = vsel %vm522, %v517, %v519
        %v525 = vsel %vm522, %v519, %v521
        %v527 = vsel %vm178, %v507, 0
        %v529 = vsel %vm182, %v523, 0
        %v531 = vsel %vm182, %v524, 0
        %v533 = vsel %vm182, %v525, 0
        %535 = vmatprep.subr.mxu0 %v531
        %536 = vmatpush1.msra.mxu0 %v529
        %537 = vmatprep.subr.mxu0 0.0
        %538 = vmatpush1.msra.mxu0 0.0
        %539 = vmatprep.subr.mxu0 0.0
        %540 = vmatpush1.msra.mxu0 0.0
        %541 = vmatprep.subr.mxu0 0.0
        %542 = vmatpush1.msra.mxu0 0.0
        %543 = vmatprep.subr.mxu0 0.0
        %544 = vmatpush1.msra.mxu0 0.0
        %545 = vmatprep.subr.mxu0 0.0
        %546 = vmatpush1.msra.mxu0 0.0
        %547 = vmatprep.subr.mxu0 0.0
        %548 = vmatpush1.msra.mxu0 0.0
        %549 = vmatprep.subr.mxu0 0.0
        %550 = vmatpush1.msra.mxu0 0.0
        %551 = vmatprep.subr.mxu0 0.0
        %552 = vmatpush1.msra.mxu0 0.0
        %553 = vmatprep.subr.mxu0 0.0
        %554 = vmatpush1.msra.mxu0 0.0
        %555 = vmatprep.subr.mxu0 0.0
        %556 = vmatpush1.msra.mxu0 0.0
        %557 = vmatprep.subr.mxu0 0.0
        %558 = vmatpush1.msra.mxu0 0.0
        %559 = vmatprep.subr.mxu0 0.0
        %560 = vmatpush1.msra.mxu0 0.0
        %561 = vmatprep.subr.mxu0 0.0
        %562 = vmatpush1.msra.mxu0 0.0
        %563 = vmatprep.subr.mxu0 0.0
        %564 = vmatpush1.msra.mxu0 0.0
        %565 = vmatprep.subr.mxu0 0.0
        %566 = vmatpush1.msra.mxu0 0.0
        %567 = vmatprep.subr.mxu0 0.0
        %568 = vmatpush1.msra.mxu0 0.0
        %569 = vmatprep.subr.mxu0 0.0
        %570 = vmatpush1.msra.mxu0 0.0
        %571 = vmatprep.subr.mxu0 0.0
        %572 = vmatpush1.msra.mxu0 0.0
        %573 = vmatprep.subr.mxu0 0.0
        %574 = vmatpush1.msra.mxu0 0.0
        %575 = vmatprep.subr.mxu0 0.0
        %576 = vmatpush1.msra.mxu0 0.0
        %577 = vmatprep.subr.mxu0 0.0
        %578 = vmatpush1.msra.mxu0 0.0
        %579 = vmatprep.subr.mxu0 0.0
        %580 = vmatpush1.msra.mxu0 0.0
        %581 = vmatprep.subr.mxu0 0.0
        %582 = vmatpush1.msra.mxu0 0.0
        %583 = vmatprep.subr.mxu0 0.0
        %584 = vmatpush1.msra.mxu0 0.0
        %585 = vmatprep.subr.mxu0 0.0
        %586 = vmatpush1.msra.mxu0 0.0
        %587 = vmatprep.subr.mxu0 0.0
        %588 = vmatpush1.msra.mxu0 0.0
        %589 = vmatprep.subr.mxu0 0.0
        %590 = vmatpush1.msra.mxu0 0.0
        %591 = vmatprep.subr.mxu0 0.0
        %592 = vmatpush1.msra.mxu0 0.0
        %593 = vmatprep.subr.mxu0 0.0
        %594 = vmatpush1.msra.mxu0 0.0
        %595 = vmatprep.subr.mxu0 0.0
        %596 = vmatpush1.msra.mxu0 0.0
        %597 = vmatprep.subr.mxu0 0.0
        %598 = vmatpush1.msra.mxu0 0.0
        %599 = vmatprep.mubr.f32.mxu0 0.0
        %600 = vmatmul.mubr.f32.gmra.mrb[0].mxu0 %v527
        %v601 = vpop.f32.mrb[0].mxu0
        %v602 = vadd.f32 0.0, %v601
        %v603 = vpop.f32.mrb[0].mxu0
        %v604 = vadd.f32 0.0, %v603
        %605 = vdwg.mxu0
        %606 = vmatprep.subr.mxu0 0.0
        %607 = vmatpush1.msra.mxu0 %v533
        %608 = vmatprep.subr.mxu0 0.0
        %609 = vmatpush1.msra.mxu0 0.0
        %610 = vmatprep.subr.mxu0 0.0
        %611 = vmatpush1.msra.mxu0 0.0
        %612 = vmatprep.subr.mxu0 0.0
        %613 = vmatpush1.msra.mxu0 0.0
        %614 = vmatprep.subr.mxu0 0.0
        %615 = vmatpush1.msra.mxu0 0.0
        %616 = vmatprep.subr.mxu0 0.0
        %617 = vmatpush1.msra.mxu0 0.0
        %618 = vmatprep.subr.mxu0 0.0
        %619 = vmatpush1.msra.mxu0 0.0
        %620 = vmatprep.subr.mxu0 0.0
        %621 = vmatpush1.msra.mxu0 0.0
        %622 = vmatprep.subr.mxu0 0.0
        %623 = vmatpush1.msra.mxu0 0.0
        %624 = vmatprep.subr.mxu0 0.0
        %625 = vmatpush1.msra.mxu0 0.0
        %626 = vmatprep.subr.mxu0 0.0
        %627 = vmatpush1.msra.mxu0 0.0
        %628 = vmatprep.subr.mxu0 0.0
        %629 = vmatpush1.msra.mxu0 0.0
        %630 = vmatprep.subr.mxu0 0.0
        %631 = vmatpush1.msra.mxu0 0.0
        %632 = vmatprep.subr.mxu0 0.0
        %633 = vmatpush1.msra.mxu0 0.0
        %634 = vmatprep.subr.mxu0 0.0
        %635 = vmatpush1.msra.mxu0 0.0
        %636 = vmatprep.subr.mxu0 0.0
        %637 = vmatpush1.msra.mxu0 0.0
        %638 = vmatprep.subr.mxu0 0.0
        %639 = vmatpush1.msra.mxu0 0.0
        %640 = vmatprep.subr.mxu0 0.0
        %641 = vmatpush1.msra.mxu0 0.0
        %642 = vmatprep.subr.mxu0 0.0
        %643 = vmatpush1.msra.mxu0 0.0
        %644 = vmatprep.subr.mxu0 0.0
        %645 = vmatpush1.msra.mxu0 0.0
        %646 = vmatprep.subr.mxu0 0.0
        %647 = vmatpush1.msra.mxu0 0.0
        %648 = vmatprep.subr.mxu0 0.0
        %649 = vmatpush1.msra.mxu0 0.0
        %650 = vmatprep.subr.mxu0 0.0
        %651 = vmatpush1.msra.mxu0 0.0
        %652 = vmatprep.subr.mxu0 0.0
        %653 = vmatpush1.msra.mxu0 0.0
        %654 = vmatprep.subr.mxu0 0.0
        %655 = vmatpush1.msra.mxu0 0.0
        %656 = vmatprep.subr.mxu0 0.0
        %657 = vmatpush1.msra.mxu0 0.0
        %658 = vmatprep.subr.mxu0 0.0
        %659 = vmatpush1.msra.mxu0 0.0
        %660 = vmatprep.subr.mxu0 0.0
        %661 = vmatpush1.msra.mxu0 0.0
        %662 = vmatprep.subr.mxu0 0.0
        %663 = vmatpush1.msra.mxu0 0.0
        %664 = vmatprep.subr.mxu0 0.0
        %665 = vmatpush1.msra.mxu0 0.0
        %666 = vmatprep.subr.mxu0 0.0
        %667 = vmatpush1.msra.mxu0 0.0
        %668 = vmatprep.subr.mxu0 0.0
        %669 = vmatpush1.msra.mxu0 0.0
        %670 = vmatprep.mubr.f32.mxu0 0.0
        %671 = vmatmul.mubr.f32.gmra.mrb[0].mxu0 %v527
        %v672 = vpop.f32.mrb[0].mxu0
        %v673 = vadd.f32 0.0, %v672
        %v674 = vpop.f32.mrb[0].mxu0
        %675 = vdwg.mxu0
        %v676 = vadd.f32 %v503, %v602
        %v677 = vadd.f32 %v504, %v604
        %v678 = vadd.f32 %v505, %v673
        %s679 = scalar_lea.vmem %s1, 24
        %v680 = vld [vmem:[%s679] sm:$0xff]
        %v681 = vld [vmem:[%s168] sm:$0xff]
        %v682 = vld [vmem:[%s168 + $0x8] sm:$0xff]
        %v685 = vcombine.high %v681, %v681
        %v686 = vcombine.high %v682, %v682
        %687 = vrot.lane.b32.xlu0 %v681, 110
        %v688 = vpop.permute.xlu0 %687
        %689 = vrot.lane.b32.xlu0 %v685, 110
        %v690 = vpop.permute.xlu0 %689
        %691 = vrot.lane.b32.xlu0 %v682, 110
        %v692 = vpop.permute.xlu0 %691
        %693 = vrot.lane.b32.xlu0 %v686, 110
        %v694 = vpop.permute.xlu0 %693
        %vm695 = vcmask 900096
        %v696 = vsel %vm695, %v688, %v690
        %v697 = vsel %vm695, %v690, %v692
        %v698 = vsel %vm695, %v692, %v694
        %v700 = vsel %vm178, %v680, 0
        %v702 = vsel %vm182, %v696, 0
        %v704 = vsel %vm182, %v697, 0
        %v706 = vsel %vm182, %v698, 0
        %708 = vmatprep.subr.mxu0 %v704
        %709 = vmatpush1.msra.mxu0 %v702
        %710 = vmatprep.subr.mxu0 0.0
        %711 = vmatpush1.msra.mxu0 0.0
        %712 = vmatprep.subr.mxu0 0.0
        %713 = vmatpush1.msra.mxu0 0.0
        %714 = vmatprep.subr.mxu0 0.0
        %715 = vmatpush1.msra.mxu0 0.0
        %716 = vmatprep.subr.mxu0 0.0
        %717 = vmatpush1.msra.mxu0 0.0
        %718 = vmatprep.subr.mxu0 0.0
        %719 = vmatpush1.msra.mxu0 0.0
        %720 = vmatprep.subr.mxu0 0.0
        %721 = vmatpush1.msra.mxu0 0.0
        %722 = vmatprep.subr.mxu0 0.0
        %723 = vmatpush1.msra.mxu0 0.0
        %724 = vmatprep.subr.mxu0 0.0
        %725 = vmatpush1.msra.mxu0 0.0
        %726 = vmatprep.subr.mxu0 0.0
        %727 = vmatpush1.msra.mxu0 0.0
        %728 = vmatprep.subr.mxu0 0.0
        %729 = vmatpush1.msra.mxu0 0.0
        %730 = vmatprep.subr.mxu0 0.0
        %731 = vmatpush1.msra.mxu0 0.0
        %732 = vmatprep.subr.mxu0 0.0
        %733 = vmatpush1.msra.mxu0 0.0
        %734 = vmatprep.subr.mxu0 0.0
        %735 = vmatpush1.msra.mxu0 0.0
        %736 = vmatprep.subr.mxu0 0.0
        %737 = vmatpush1.msra.mxu0 0.0
        %738 = vmatprep.subr.mxu0 0.0
        %739 = vmatpush1.msra.mxu0 0.0
        %740 = vmatprep.subr.mxu0 0.0
        %741 = vmatpush1.msra.mxu0 0.0
        %742 = vmatprep.subr.mxu0 0.0
        %743 = vmatpush1.msra.mxu0 0.0
        %744 = vmatprep.subr.mxu0 0.0
        %745 = vmatpush1.msra.mxu0 0.0
        %746 = vmatprep.subr.mxu0 0.0
        %747 = vmatpush1.msra.mxu0 0.0
        %748 = vmatprep.subr.mxu0 0.0
        %749 = vmatpush1.msra.mxu0 0.0
        %750 = vmatprep.subr.mxu0 0.0
        %751 = vmatpush1.msra.mxu0 0.0
        %752 = vmatprep.subr.mxu0 0.0
        %753 = vmatpush1.msra.mxu0 0.0
        %754 = vmatprep.subr.mxu0 0.0
        %755 = vmatpush1.msra.mxu0 0.0
        %756 = vmatprep.subr.mxu0 0.0
        %757 = vmatpush1.msra.mxu0 0.0
        %758 = vmatprep.subr.mxu0 0.0
        %759 = vmatpush1.msra.mxu0 0.0
        %760 = vmatprep.subr.mxu0 0.0
        %761 = vmatpush1.msra.mxu0 0.0
        %762 = vmatprep.subr.mxu0 0.0
        %763 = vmatpush1.msra.mxu0 0.0
        %764 = vmatprep.subr.mxu0 0.0
        %765 = vmatpush1.msra.mxu0 0.0
        %766 = vmatprep.subr.mxu0 0.0
        %767 = vmatpush1.msra.mxu0 0.0
        %768 = vmatprep.subr.mxu0 0.0
        %769 = vmatpush1.msra.mxu0 0.0
        %770 = vmatprep.subr.mxu0 0.0
        %771 = vmatpush1.msra.mxu0 0.0
        %772 = vmatprep.mubr.f32.mxu0 0.0
        %773 = vmatmul.mubr.f32.gmra.mrb[0].mxu0 %v700
        %v774 = vpop.f32.mrb[0].mxu0
        %v775 = vadd.f32 0.0, %v774
        %v776 = vpop.f32.mrb[0].mxu0
        %v777 = vadd.f32 0.0, %v776
        %778 = vdwg.mxu0
        %779 = vmatprep.subr.mxu0 0.0
        %780 = vmatpush1.msra.mxu0 %v706
        %781 = vmatprep.subr.mxu0 0.0
        %782 = vmatpush1.msra.mxu0 0.0
        %783 = vmatprep.subr.mxu0 0.0
        %784 = vmatpush1.msra.mxu0 0.0
        %785 = vmatprep.subr.mxu0 0.0
        %786 = vmatpush1.msra.mxu0 0.0
        %787 = vmatprep.subr.mxu0 0.0
        %788 = vmatpush1.msra.mxu0 0.0
        %789 = vmatprep.subr.mxu0 0.0
        %790 = vmatpush1.msra.mxu0 0.0
        %791 = vmatprep.subr.mxu0 0.0
        %792 = vmatpush1.msra.mxu0 0.0
        %793 = vmatprep.subr.mxu0 0.0
        %794 = vmatpush1.msra.mxu0 0.0
        %795 = vmatprep.subr.mxu0 0.0
        %796 = vmatpush1.msra.mxu0 0.0
        %797 = vmatprep.subr.mxu0 0.0
        %798 = vmatpush1.msra.mxu0 0.0
        %799 = vmatprep.subr.mxu0 0.0
        %800 = vmatpush1.msra.mxu0 0.0
        %801 = vmatprep.subr.mxu0 0.0
        %802 = vmatpush1.msra.mxu0 0.0
        %803 = vmatprep.subr.mxu0 0.0
        %804 = vmatpush1.msra.mxu0 0.0
        %805 = vmatprep.subr.mxu0 0.0
        %806 = vmatpush1.msra.mxu0 0.0
        %807 = vmatprep.subr.mxu0 0.0
        %808 = vmatpush1.msra.mxu0 0.0
        %809 = vmatprep.subr.mxu0 0.0
        %810 = vmatpush1.msra.mxu0 0.0
        %811 = vmatprep.subr.mxu0 0.0
        %812 = vmatpush1.msra.mxu0 0.0
        %813 = vmatprep.subr.mxu0 0.0
        %814 = vmatpush1.msra.mxu0 0.0
        %815 = vmatprep.subr.mxu0 0.0
        %816 = vmatpush1.msra.mxu0 0.0
        %817 = vmatprep.subr.mxu0 0.0
        %818 = vmatpush1.msra.mxu0 0.0
        %819 = vmatprep.subr.mxu0 0.0
        %820 = vmatpush1.msra.mxu0 0.0
        %821 = vmatprep.subr.mxu0 0.0
        %822 = vmatpush1.msra.mxu0 0.0
        %823 = vmatprep.subr.mxu0 0.0
        %824 = vmatpush1.msra.mxu0 0.0
        %825 = vmatprep.subr.mxu0 0.0
        %826 = vmatpush1.msra.mxu0 0.0
        %827 = vmatprep.subr.mxu0 0.0
        %828 = vmatpush1.msra.mxu0 0.0
        %829 = vmatprep.subr.mxu0 0.0
        %830 = vmatpush1.msra.mxu0 0.0
        %831 = vmatprep.subr.mxu0 0.0
        %832 = vmatpush1.msra.mxu0 0.0
        %833 = vmatprep.subr.mxu0 0.0
        %834 = vmatpush1.msra.mxu0 0.0
        %835 = vmatprep.subr.mxu0 0.0
        %836 = vmatpush1.msra.mxu0 0.0
        %837 = vmatprep.subr.mxu0 0.0
        %838 = vmatpush1.msra.mxu0 0.0
        %839 = vmatprep.subr.mxu0 0.0
        %840 = vmatpush1.msra.mxu0 0.0
        %841 = vmatprep.subr.mxu0 0.0
        %842 = vmatpush1.msra.mxu0 0.0
        %843 = vmatprep.mubr.f32.mxu0 0.0
        %844 = vmatmul.mubr.f32.gmra.mrb[0].mxu0 %v700
        %v845 = vpop.f32.mrb[0].mxu0
        %v846 = vadd.f32 0.0, %v845
        %v847 = vpop.f32.mrb[0].mxu0
        %848 = vdwg.mxu0
        %v849 = vadd.f32 %v676, %v775
        %v850 = vadd.f32 %v677, %v777
        %v851 = vadd.f32 %v678, %v846
        %s852 = scalar_lea.vmem %s1, 32
        %v853 = vld [vmem:[%s852] sm:$0xff]
        %v854 = vld [vmem:[%s168] sm:$0xff]
        %v855 = vld [vmem:[%s168 + $0x8] sm:$0xff]
        %v858 = vcombine.high %v854, %v854
        %v859 = vcombine.high %v855, %v855
        %860 = vrot.lane.b32.xlu0 %v854, 109
        %v861 = vpop.permute.xlu0 %860
        %862 = vrot.lane.b32.xlu0 %v858, 109
        %v863 = vpop.permute.xlu0 %862
        %864 = vrot.lane.b32.xlu0 %v855, 109
        %v865 = vpop.permute.xlu0 %864
        %866 = vrot.lane.b32.xlu0 %v859, 109
        %v867 = vpop.permute.xlu0 %866
        %vm868 = vcmask 891904
        %v869 = vsel %vm868, %v861, %v863
        %v870 = vsel %vm868, %v863, %v865
        %v871 = vsel %vm868, %v865, %v867
        %v873 = vsel %vm178, %v853, 0
        %v875 = vsel %vm182, %v869, 0
        %v877 = vsel %vm182, %v870, 0
        %v879 = vsel %vm182, %v871, 0
        %881 = vmatprep.subr.mxu0 %v877
        %882 = vmatpush1.msra.mxu0 %v875
        %883 = vmatprep.subr.mxu0 0.0
        %884 = vmatpush1.msra.mxu0 0.0
        %885 = vmatprep.subr.mxu0 0.0
        %886 = vmatpush1.msra.mxu0 0.0
        %887 = vmatprep.subr.mxu0 0.0
        %888 = vmatpush1.msra.mxu0 0.0
        %889 = vmatprep.subr.mxu0 0.0
        %890 = vmatpush1.msra.mxu0 0.0
        %891 = vmatprep.subr.mxu0 0.0
        %892 = vmatpush1.msra.mxu0 0.0
        %893 = vmatprep.subr.mxu0 0.0
        %894 = vmatpush1.msra.mxu0 0.0
        %895 = vmatprep.subr.mxu0 0.0
        %896 = vmatpush1.msra.mxu0 0.0
        %897 = vmatprep.subr.mxu0 0.0
        %898 = vmatpush1.msra.mxu0 0.0
        %899 = vmatprep.subr.mxu0 0.0
        %900 = vmatpush1.msra.mxu0 0.0
        %901 = vmatprep.subr.mxu0 0.0
        %902 = vmatpush1.msra.mxu0 0.0
        %903 = vmatprep.subr.mxu0 0.0
        %904 = vmatpush1.msra.mxu0 0.0
        %905 = vmatprep.subr.mxu0 0.0
        %906 = vmatpush1.msra.mxu0 0.0
        %907 = vmatprep.subr.mxu0 0.0
        %908 = vmatpush1.msra.mxu0 0.0
        %909 = vmatprep.subr.mxu0 0.0
        %910 = vmatpush1.msra.mxu0 0.0
        %911 = vmatprep.subr.mxu0 0.0
        %912 = vmatpush1.msra.mxu0 0.0
        %913 = vmatprep.subr.mxu0 0.0
        %914 = vmatpush1.msra.mxu0 0.0
        %915 = vmatprep.subr.mxu0 0.0
        %916 = vmatpush1.msra.mxu0 0.0
        %917 = vmatprep.subr.mxu0 0.0
        %918 = vmatpush1.msra.mxu0 0.0
        %919 = vmatprep.subr.mxu0 0.0
        %920 = vmatpush1.msra.mxu0 0.0
        %921 = vmatprep.subr.mxu0 0.0
        %922 = vmatpush1.msra.mxu0 0.0
        %923 = vmatprep.subr.mxu0 0.0
        %924 = vmatpush1.msra.mxu0 0.0
        %925 = vmatprep.subr.mxu0 0.0
        %926 = vmatpush1.msra.mxu0 0.0
        %927 = vmatprep.subr.mxu0 0.0
        %928 = vmatpush1.msra.mxu0 0.0
        %929 = vmatprep.subr.mxu0 0.0
        %930 = vmatpush1.msra.mxu0 0.0
        %931 = vmatprep.subr.mxu0 0.0
        %932 = vmatpush1.msra.mxu0 0.0
        %933 = vmatprep.subr.mxu0 0.0
        %934 = vmatpush1.msra.mxu0 0.0
        %935 = vmatprep.subr.mxu0 0.0
        %936 = vmatpush1.msra.mxu0 0.0
        %937 = vmatprep.subr.mxu0 0.0
        %938 = vmatpush1.msra.mxu0 0.0
        %939 = vmatprep.subr.mxu0 0.0
        %940 = vmatpush1.msra.mxu0 0.0
        %941 = vmatprep.subr.mxu0 0.0
        %942 = vmatpush1.msra.mxu0 0.0
        %943 = vmatprep.subr.mxu0 0.0
        %944 = vmatpush1.msra.mxu0 0.0
        %945 = vmatprep.mubr.f32.mxu0 0.0
        %946 = vmatmul.mubr.f32.gmra.mrb[0].mxu0 %v873
        %v947 = vpop.f32.mrb[0].mxu0
        %v948 = vadd.f32 0.0, %v947
        %v949 = vpop.f32.mrb[0].mxu0
        %v950 = vadd.f32 0.0, %v949
        %951 = vdwg.mxu0
        %952 = vmatprep.subr.mxu0 0.0
        %953 = vmatpush1.msra.mxu0 %v879
        %954 = vmatprep.subr.mxu0 0.0
        %955 = vmatpush1.msra.mxu0 0.0
        %956 = vmatprep.subr.mxu0 0.0
        %957 = vmatpush1.msra.mxu0 0.0
        %958 = vmatprep.subr.mxu0 0.0
        %959 = vmatpush1.msra.mxu0 0.0
        %960 = vmatprep.subr.mxu0 0.0
        %961 = vmatpush1.msra.mxu0 0.0
        %962 = vmatprep.subr.mxu0 0.0
        %963 = vmatpush1.msra.mxu0 0.0
        %964 = vmatprep.subr.mxu0 0.0
        %965 = vmatpush1.msra.mxu0 0.0
        %966 = vmatprep.subr.mxu0 0.0
        %967 = vmatpush1.msra.mxu0 0.0
        %968 = vmatprep.subr.mxu0 0.0
        %969 = vmatpush1.msra.mxu0 0.0
        %970 = vmatprep.subr.mxu0 0.0
        %971 = vmatpush1.msra.mxu0 0.0
        %972 = vmatprep.subr.mxu0 0.0
        %973 = vmatpush1.msra.mxu0 0.0
        %974 = vmatprep.subr.mxu0 0.0
        %975 = vmatpush1.msra.mxu0 0.0
        %976 = vmatprep.subr.mxu0 0.0
        %977 = vmatpush1.msra.mxu0 0.0
        %978 = vmatprep.subr.mxu0 0.0
        %979 = vmatpush1.msra.mxu0 0.0
        %980 = vmatprep.subr.mxu0 0.0
        %981 = vmatpush1.msra.mxu0 0.0
        %982 = vmatprep.subr.mxu0 0.0
        %983 = vmatpush1.msra.mxu0 0.0
        %984 = vmatprep.subr.mxu0 0.0
        %985 = vmatpush1.msra.mxu0 0.0
        %986 = vmatprep.subr.mxu0 0.0
        %987 = vmatpush1.msra.mxu0 0.0
        %988 = vmatprep.subr.mxu0 0.0
        %989 = vmatpush1.msra.mxu0 0.0
        %990 = vmatprep.subr.mxu0 0.0
        %991 = vmatpush1.msra.mxu0 0.0
        %992 = vmatprep.subr.mxu0 0.0
        %993 = vmatpush1.msra.mxu0 0.0
        %994 = vmatprep.subr.mxu0 0.0
        %995 = vmatpush1.msra.mxu0 0.0
        %996 = vmatprep.subr.mxu0 0.0
        %997 = vmatpush1.msra.mxu0 0.0
        %998 = vmatprep.subr.mxu0 0.0
        %999 = vmatpush1.msra.mxu0 0.0
        %1000 = vmatprep.subr.mxu0 0.0
        %1001 = vmatpush1.msra.mxu0 0.0
        %1002 = vmatprep.subr.mxu0 0.0
        %1003 = vmatpush1.msra.mxu0 0.0
        %1004 = vmatprep.subr.mxu0 0.0
        %1005 = vmatpush1.msra.mxu0 0.0
        %1006 = vmatprep.subr.mxu0 0.0
        %1007 = vmatpush1.msra.mxu0 0.0
        %1008 = vmatprep.subr.mxu0 0.0
        %1009 = vmatpush1.msra.mxu0 0.0
        %1010 = vmatprep.subr.mxu0 0.0
        %1011 = vmatpush1.msra.mxu0 0.0
        %1012 = vmatprep.subr.mxu0 0.0
        %1013 = vmatpush1.msra.mxu0 0.0
        %1014 = vmatprep.subr.mxu0 0.0
        %1015 = vmatpush1.msra.mxu0 0.0
        %1016 = vmatprep.mubr.f32.mxu0 0.0
        %1017 = vmatmul.mubr.f32.gmra.mrb[0].mxu0 %v873
        %v1018 = vpop.f32.mrb[0].mxu0
        %v1019 = vadd.f32 0.0, %v1018
        %v1020 = vpop.f32.mrb[0].mxu0
        %1021 = vdwg.mxu0
        %v1022 = vadd.f32 %v849, %v948
        %v1023 = vadd.f32 %v850, %v950
        %v1024 = vadd.f32 %v851, %v1019
        %s1025 = scalar_lea.vmem %s1, 40
        %v1026 = vld [vmem:[%s1025] sm:$0xff]
        %v1027 = vld [vmem:[%s168] sm:$0xff]
        %v1028 = vld [vmem:[%s168 + $0x8] sm:$0xff]
        %v1031 = vcombine.high %v1027, %v1027
        %v1032 = vcombine.high %v1028, %v1028
        %1033 = vrot.lane.b32.xlu0 %v1027, 108
        %v1034 = vpop.permute.xlu0 %1033
        %1035 = vrot.lane.b32.xlu0 %v1031, 108
        %v1036 = vpop.permute.xlu0 %1035
        %1037 = vrot.lane.b32.xlu0 %v1028, 108
        %v1038 = vpop.permute.xlu0 %1037
        %1039 = vrot.lane.b32.xlu0 %v1032, 108
        %v1040 = vpop.permute.xlu0 %1039
        %vm1041 = vcmask 883712
        %v1042 = vsel %vm1041, %v1034, %v1036
        %v1043 = vsel %vm1041, %v1036, %v1038
        %v1044 = vsel %vm1041, %v1038, %v1040
        %v1046 = vsel %vm178, %v1026, 0
        %v1048 = vsel %vm182, %v1042, 0
        %v1050 = vsel %vm182, %v1043, 0
        %v1052 = vsel %vm182, %v1044, 0
        %1054 = vmatprep.subr.mxu0 %v1050
        %1055 = vmatpush1.msra.mxu0 %v1048
        %1056 = vmatprep.subr.mxu0 0.0
        %1057 = vmatpush1.msra.mxu0 0.0
        %1058 = vmatprep.subr.mxu0 0.0
        %1059 = vmatpush1.msra.mxu0 0.0
        %1060 = vmatprep.subr.mxu0 0.0
        %1061 = vmatpush1.msra.mxu0 0.0
        %1062 = vmatprep.subr.mxu0 0.0
        %1063 = vmatpush1.msra.mxu0 0.0
        %1064 = vmatprep.subr.mxu0 0.0
        %1065 = vmatpush1.msra.mxu0 0.0
        %1066 = vmatprep.subr.mxu0 0.0
        %1067 = vmatpush1.msra.mxu0 0.0
        %1068 = vmatprep.subr.mxu0 0.0
        %1069 = vmatpush1.msra.mxu0 0.0
        %1070 = vmatprep.subr.mxu0 0.0
        %1071 = vmatpush1.msra.mxu0 0.0
        %1072 = vmatprep.subr.mxu0 0.0
        %1073 = vmatpush1.msra.mxu0 0.0
        %1074 = vmatprep.subr.mxu0 0.0
        %1075 = vmatpush1.msra.mxu0 0.0
        %1076 = vmatprep.subr.mxu0 0.0
        %1077 = vmatpush1.msra.mxu0 0.0
        %1078 = vmatprep.subr.mxu0 0.0
        %1079 = vmatpush1.msra.mxu0 0.0
        %1080 = vmatprep.subr.mxu0 0.0
        %1081 = vmatpush1.msra.mxu0 0.0
        %1082 = vmatprep.subr.mxu0 0.0
        %1083 = vmatpush1.msra.mxu0 0.0
        %1084 = vmatprep.subr.mxu0 0.0
        %1085 = vmatpush1.msra.mxu0 0.0
        %1086 = vmatprep.subr.mxu0 0.0
        %1087 = vmatpush1.msra.mxu0 0.0
        %1088 = vmatprep.subr.mxu0 0.0
        %1089 = vmatpush1.msra.mxu0 0.0
        %1090 = vmatprep.subr.mxu0 0.0
        %1091 = vmatpush1.msra.mxu0 0.0
        %1092 = vmatprep.subr.mxu0 0.0
        %1093 = vmatpush1.msra.mxu0 0.0
        %1094 = vmatprep.subr.mxu0 0.0
        %1095 = vmatpush1.msra.mxu0 0.0
        %1096 = vmatprep.subr.mxu0 0.0
        %1097 = vmatpush1.msra.mxu0 0.0
        %1098 = vmatprep.subr.mxu0 0.0
        %1099 = vmatpush1.msra.mxu0 0.0
        %1100 = vmatprep.subr.mxu0 0.0
        %1101 = vmatpush1.msra.mxu0 0.0
        %1102 = vmatprep.subr.mxu0 0.0
        %1103 = vmatpush1.msra.mxu0 0.0
        %1104 = vmatprep.subr.mxu0 0.0
        %1105 = vmatpush1.msra.mxu0 0.0
        %1106 = vmatprep.subr.mxu0 0.0
        %1107 = vmatpush1.msra.mxu0 0.0
        %1108 = vmatprep.subr.mxu0 0.0
        %1109 = vmatpush1.msra.mxu0 0.0
        %1110 = vmatprep.subr.mxu0 0.0
        %1111 = vmatpush1.msra.mxu0 0.0
        %1112 = vmatprep.subr.mxu0 0.0
        %1113 = vmatpush1.msra.mxu0 0.0
        %1114 = vmatprep.subr.mxu0 0.0
        %1115 = vmatpush1.msra.mxu0 0.0
        %1116 = vmatprep.subr.mxu0 0.0
        %1117 = vmatpush1.msra.mxu0 0.0
        %1118 = vmatprep.mubr.f32.mxu0 0.0
        %1119 = vmatmul.mubr.f32.gmra.mrb[0].mxu0 %v1046
        %v1120 = vpop.f32.mrb[0].mxu0
        %v1121 = vadd.f32 0.0, %v1120
        %v1122 = vpop.f32.mrb[0].mxu0
        %v1123 = vadd.f32 0.0, %v1122
        %1124 = vdwg.mxu0
        %1125 = vmatprep.subr.mxu0 0.0
        %1126 = vmatpush1.msra.mxu0 %v1052
        %1127 = vmatprep.subr.mxu0 0.0
        %1128 = vmatpush1.msra.mxu0 0.0
        %1129 = vmatprep.subr.mxu0 0.0
        %1130 = vmatpush1.msra.mxu0 0.0
        %1131 = vmatprep.subr.mxu0 0.0
        %1132 = vmatpush1.msra.mxu0 0.0
        %1133 = vmatprep.subr.mxu0 0.0
        %1134 = vmatpush1.msra.mxu0 0.0
        %1135 = vmatprep.subr.mxu0 0.0
        %1136 = vmatpush1.msra.mxu0 0.0
        %1137 = vmatprep.subr.mxu0 0.0
        %1138 = vmatpush1.msra.mxu0 0.0
        %1139 = vmatprep.subr.mxu0 0.0
        %1140 = vmatpush1.msra.mxu0 0.0
        %1141 = vmatprep.subr.mxu0 0.0
        %1142 = vmatpush1.msra.mxu0 0.0
        %1143 = vmatprep.subr.mxu0 0.0
        %1144 = vmatpush1.msra.mxu0 0.0
        %1145 = vmatprep.subr.mxu0 0.0
        %1146 = vmatpush1.msra.mxu0 0.0
        %1147 = vmatprep.subr.mxu0 0.0
        %1148 = vmatpush1.msra.mxu0 0.0
        %1149 = vmatprep.subr.mxu0 0.0
        %1150 = vmatpush1.msra.mxu0 0.0
        %1151 = vmatprep.subr.mxu0 0.0
        %1152 = vmatpush1.msra.mxu0 0.0
        %1153 = vmatprep.subr.mxu0 0.0
        %1154 = vmatpush1.msra.mxu0 0.0
        %1155 = vmatprep.subr.mxu0 0.0
        %1156 = vmatpush1.msra.mxu0 0.0
        %1157 = vmatprep.subr.mxu0 0.0
        %1158 = vmatpush1.msra.mxu0 0.0
        %1159 = vmatprep.subr.mxu0 0.0
        %1160 = vmatpush1.msra.mxu0 0.0
        %1161 = vmatprep.subr.mxu0 0.0
        %1162 = vmatpush1.msra.mxu0 0.0
        %1163 = vmatprep.subr.mxu0 0.0
        %1164 = vmatpush1.msra.mxu0 0.0
        %1165 = vmatprep.subr.mxu0 0.0
        %1166 = vmatpush1.msra.mxu0 0.0
        %1167 = vmatprep.subr.mxu0 0.0
        %1168 = vmatpush1.msra.mxu0 0.0
        %1169 = vmatprep.subr.mxu0 0.0
        %1170 = vmatpush1.msra.mxu0 0.0
        %1171 = vmatprep.subr.mxu0 0.0
        %1172 = vmatpush1.msra.mxu0 0.0
        %1173 = vmatprep.subr.mxu0 0.0
        %1174 = vmatpush1.msra.mxu0 0.0
        %1175 = vmatprep.subr.mxu0 0.0
        %1176 = vmatpush1.msra.mxu0 0.0
        %1177 = vmatprep.subr.mxu0 0.0
        %1178 = vmatpush1.msra.mxu0 0.0
        %1179 = vmatprep.subr.mxu0 0.0
        %1180 = vmatpush1.msra.mxu0 0.0
        %1181 = vmatprep.subr.mxu0 0.0
        %1182 = vmatpush1.msra.mxu0 0.0
        %1183 = vmatprep.subr.mxu0 0.0
        %1184 = vmatpush1.msra.mxu0 0.0
        %1185 = vmatprep.subr.mxu0 0.0
        %1186 = vmatpush1.msra.mxu0 0.0
        %1187 = vmatprep.subr.mxu0 0.0
        %1188 = vmatpush1.msra.mxu0 0.0
        %1189 = vmatprep.mubr.f32.mxu0 0.0
        %1190 = vmatmul.mubr.f32.gmra.mrb[0].mxu0 %v1046
        %v1191 = vpop.f32.mrb[0].mxu0
        %v1192 = vadd.f32 0.0, %v1191
        %v1193 = vpop.f32.mrb[0].mxu0
        %1194 = vdwg.mxu0
        %v1195 = vadd.f32 %v1022, %v1121
        %v1196 = vadd.f32 %v1023, %v1123
        %v1197 = vadd.f32 %v1024, %v1192
        %s1198 = scalar_lea.vmem %s1, 48
        %v1199 = vld [vmem:[%s1198] sm:$0xff]
        %v1200 = vld [vmem:[%s168] sm:$0xff]
        %v1201 = vld [vmem:[%s168 + $0x8] sm:$0xff]
        %v1204 = vcombine.high %v1200, %v1200
        %v1205 = vcombine.high %v1201, %v1201
        %1206 = vrot.lane.b32.xlu0 %v1200, 92
        %v1207 = vpop.permute.xlu0 %1206
        %1208 = vrot.lane.b32.xlu0 %v1204, 92
        %v1209 = vpop.permute.xlu0 %1208
        %1210 = vrot.lane.b32.xlu0 %v1201, 92
        %v1211 = vpop.permute.xlu0 %1210
        %1212 = vrot.lane.b32.xlu0 %v1205, 92
        %v1213 = vpop.permute.xlu0 %1212
        %vm1214 = vcmask 752640
        %v1215 = vsel %vm1214, %v1207, %v1209
        %v1216 = vsel %vm1214, %v1209, %v1211
        %v1217 = vsel %vm1214, %v1211, %v1213
        %v1219 = vsel %vm178, %v1199, 0
        %v1221 = vsel %vm182, %v1215, 0
        %v1223 = vsel %vm182, %v1216, 0
        %v1225 = vsel %vm182, %v1217, 0
        %1227 = vmatprep.subr.mxu0 %v1223
        %1228 = vmatpush1.msra.mxu0 %v1221
        %1229 = vmatprep.subr.mxu0 0.0
        %1230 = vmatpush1.msra.mxu0 0.0
        %1231 = vmatprep.subr.mxu0 0.0
        %1232 = vmatpush1.msra.mxu0 0.0
        %1233 = vmatprep.subr.mxu0 0.0
        %1234 = vmatpush1.msra.mxu0 0.0
        %1235 = vmatprep.subr.mxu0 0.0
        %1236 = vmatpush1.msra.mxu0 0.0
        %1237 = vmatprep.subr.mxu0 0.0
        %1238 = vmatpush1.msra.mxu0 0.0
        %1239 = vmatprep.subr.mxu0 0.0
        %1240 = vmatpush1.msra.mxu0 0.0
        %1241 = vmatprep.subr.mxu0 0.0
        %1242 = vmatpush1.msra.mxu0 0.0
        %1243 = vmatprep.subr.mxu0 0.0
        %1244 = vmatpush1.msra.mxu0 0.0
        %1245 = vmatprep.subr.mxu0 0.0
        %1246 = vmatpush1.msra.mxu0 0.0
        %1247 = vmatprep.subr.mxu0 0.0
        %1248 = vmatpush1.msra.mxu0 0.0
        %1249 = vmatprep.subr.mxu0 0.0
        %1250 = vmatpush1.msra.mxu0 0.0
        %1251 = vmatprep.subr.mxu0 0.0
        %1252 = vmatpush1.msra.mxu0 0.0
        %1253 = vmatprep.subr.mxu0 0.0
        %1254 = vmatpush1.msra.mxu0 0.0
        %1255 = vmatprep.subr.mxu0 0.0
        %1256 = vmatpush1.msra.mxu0 0.0
        %1257 = vmatprep.subr.mxu0 0.0
        %1258 = vmatpush1.msra.mxu0 0.0
        %1259 = vmatprep.subr.mxu0 0.0
        %1260 = vmatpush1.msra.mxu0 0.0
        %1261 = vmatprep.subr.mxu0 0.0
        %1262 = vmatpush1.msra.mxu0 0.0
        %1263 = vmatprep.subr.mxu0 0.0
        %1264 = vmatpush1.msra.mxu0 0.0
        %1265 = vmatprep.subr.mxu0 0.0
        %1266 = vmatpush1.msra.mxu0 0.0
        %1267 = vmatprep.subr.mxu0 0.0
        %1268 = vmatpush1.msra.mxu0 0.0
        %1269 = vmatprep.subr.mxu0 0.0
        %1270 = vmatpush1.msra.mxu0 0.0
        %1271 = vmatprep.subr.mxu0 0.0
        %1272 = vmatpush1.msra.mxu0 0.0
        %1273 = vmatprep.subr.mxu0 0.0
        %1274 = vmatpush1.msra.mxu0 0.0
        %1275 = vmatprep.subr.mxu0 0.0
        %1276 = vmatpush1.msra.mxu0 0.0
        %1277 = vmatprep.subr.mxu0 0.0
        %1278 = vmatpush1.msra.mxu0 0.0
        %1279 = vmatprep.subr.mxu0 0.0
        %1280 = vmatpush1.msra.mxu0 0.0
        %1281 = vmatprep.subr.mxu0 0.0
        %1282 = vmatpush1.msra.mxu0 0.0
        %1283 = vmatprep.subr.mxu0 0.0
        %1284 = vmatpush1.msra.mxu0 0.0
        %1285 = vmatprep.subr.mxu0 0.0
        %1286 = vmatpush1.msra.mxu0 0.0
        %1287 = vmatprep.subr.mxu0 0.0
        %1288 = vmatpush1.msra.mxu0 0.0
        %1289 = vmatprep.subr.mxu0 0.0
        %1290 = vmatpush1.msra.mxu0 0.0
        %1291 = vmatprep.mubr.f32.mxu0 0.0
        %1292 = vmatmul.mubr.f32.gmra.mrb[0].mxu0 %v1219
        %v1293 = vpop.f32.mrb[0].mxu0
        %v1294 = vadd.f32 0.0, %v1293
        %v1295 = vpop.f32.mrb[0].mxu0
        %v1296 = vadd.f32 0.0, %v1295
        %1297 = vdwg.mxu0
        %1298 = vmatprep.subr.mxu0 0.0
        %1299 = vmatpush1.msra.mxu0 %v1225
        %1300 = vmatprep.subr.mxu0 0.0
        %1301 = vmatpush1.msra.mxu0 0.0
        %1302 = vmatprep.subr.mxu0 0.0
        %1303 = vmatpush1.msra.mxu0 0.0
        %1304 = vmatprep.subr.mxu0 0.0
        %1305 = vmatpush1.msra.mxu0 0.0
        %1306 = vmatprep.subr.mxu0 0.0
        %1307 = vmatpush1.msra.mxu0 0.0
        %1308 = vmatprep.subr.mxu0 0.0
        %1309 = vmatpush1.msra.mxu0 0.0
        %1310 = vmatprep.subr.mxu0 0.0
        %1311 = vmatpush1.msra.mxu0 0.0
        %1312 = vmatprep.subr.mxu0 0.0
        %1313 = vmatpush1.msra.mxu0 0.0
        %1314 = vmatprep.subr.mxu0 0.0
        %1315 = vmatpush1.msra.mxu0 0.0
        %1316 = vmatprep.subr.mxu0 0.0
        %1317 = vmatpush1.msra.mxu0 0.0
        %1318 = vmatprep.subr.mxu0 0.0
        %1319 = vmatpush1.msra.mxu0 0.0
        %1320 = vmatprep.subr.mxu0 0.0
        %1321 = vmatpush1.msra.mxu0 0.0
        %1322 = vmatprep.subr.mxu0 0.0
        %1323 = vmatpush1.msra.mxu0 0.0
        %1324 = vmatprep.subr.mxu0 0.0
        %1325 = vmatpush1.msra.mxu0 0.0
        %1326 = vmatprep.subr.mxu0 0.0
        %1327 = vmatpush1.msra.mxu0 0.0
        %1328 = vmatprep.subr.mxu0 0.0
        %1329 = vmatpush1.msra.mxu0 0.0
        %1330 = vmatprep.subr.mxu0 0.0
        %1331 = vmatpush1.msra.mxu0 0.0
        %1332 = vmatprep.subr.mxu0 0.0
        %1333 = vmatpush1.msra.mxu0 0.0
        %1334 = vmatprep.subr.mxu0 0.0
        %1335 = vmatpush1.msra.mxu0 0.0
        %1336 = vmatprep.subr.mxu0 0.0
        %1337 = vmatpush1.msra.mxu0 0.0
        %1338 = vmatprep.subr.mxu0 0.0
        %1339 = vmatpush1.msra.mxu0 0.0
        %1340 = vmatprep.subr.mxu0 0.0
        %1341 = vmatpush1.msra.mxu0 0.0
        %1342 = vmatprep.subr.mxu0 0.0
        %1343 = vmatpush1.msra.mxu0 0.0
        %1344 = vmatprep.subr.mxu0 0.0
        %1345 = vmatpush1.msra.mxu0 0.0
        %1346 = vmatprep.subr.mxu0 0.0
        %1347 = vmatpush1.msra.mxu0 0.0
        %1348 = vmatprep.subr.mxu0 0.0
        %1349 = vmatpush1.msra.mxu0 0.0
        %1350 = vmatprep.subr.mxu0 0.0
        %1351 = vmatpush1.msra.mxu0 0.0
        %1352 = vmatprep.subr.mxu0 0.0
        %1353 = vmatpush1.msra.mxu0 0.0
        %1354 = vmatprep.subr.mxu0 0.0
        %1355 = vmatpush1.msra.mxu0 0.0
        %1356 = vmatprep.subr.mxu0 0.0
        %1357 = vmatpush1.msra.mxu0 0.0
        %1358 = vmatprep.subr.mxu0 0.0
        %1359 = vmatpush1.msra.mxu0 0.0
        %1360 = vmatprep.subr.mxu0 0.0
        %1361 = vmatpush1.msra.mxu0 0.0
        %1362 = vmatprep.mubr.f32.mxu0 0.0
        %1363 = vmatmul.mubr.f32.gmra.mrb[0].mxu0 %v1219
        %v1364 = vpop.f32.mrb[0].mxu0
        %v1365 = vadd.f32 0.0, %v1364
        %v1366 = vpop.f32.mrb[0].mxu0
        %1367 = vdwg.mxu0
        %v1368 = vadd.f32 %v1195, %v1294
        %v1369 = vadd.f32 %v1196, %v1296
        %v1370 = vadd.f32 %v1197, %v1365
        %s1371 = scalar_lea.vmem %s1, 56
        %v1372 = vld [vmem:[%s1371] sm:$0xff]
        %v1373 = vld [vmem:[%s168] sm:$0xff]
        %v1374 = vld [vmem:[%s168 + $0x8] sm:$0xff]
        %v1377 = vcombine.high %v1373, %v1373
        %v1378 = vcombine.high %v1374, %v1374
        %1379 = vrot.lane.b32.xlu0 %v1373, 91
        %v1380 = vpop.permute.xlu0 %1379
        %1381 = vrot.lane.b32.xlu0 %v1377, 91
        %v1382 = vpop.permute.xlu0 %1381
        %1383 = vrot.lane.b32.xlu0 %v1374, 91
        %v1384 = vpop.permute.xlu0 %1383
        %1385 = vrot.lane.b32.xlu0 %v1378, 91
        %v1386 = vpop.permute.xlu0 %1385
        %vm1387 = vcmask 744448
        %v1388 = vsel %vm1387, %v1380, %v1382
        %v1389 = vsel %vm1387, %v1382, %v1384
        %v1390 = vsel %vm1387, %v1384, %v1386
        %v1392 = vsel %vm178, %v1372, 0
        %v1394 = vsel %vm182, %v1388, 0
        %v1396 = vsel %vm182, %v1389, 0
        %v1398 = vsel %vm182, %v1390, 0
        %1400 = vmatprep.subr.mxu0 %v1396
        %1401 = vmatpush1.msra.mxu0 %v1394
        %1402 = vmatprep.subr.mxu0 0.0
        %1403 = vmatpush1.msra.mxu0 0.0
        %1404 = vmatprep.subr.mxu0 0.0
        %1405 = vmatpush1.msra.mxu0 0.0
        %1406 = vmatprep.subr.mxu0 0.0
        %1407 = vmatpush1.msra.mxu0 0.0
        %1408 = vmatprep.subr.mxu0 0.0
        %1409 = vmatpush1.msra.mxu0 0.0
        %1410 = vmatprep.subr.mxu0 0.0
        %1411 = vmatpush1.msra.mxu0 0.0
        %1412 = vmatprep.subr.mxu0 0.0
        %1413 = vmatpush1.msra.mxu0 0.0
        %1414 = vmatprep.subr.mxu0 0.0
        %1415 = vmatpush1.msra.mxu0 0.0
        %1416 = vmatprep.subr.mxu0 0.0
        %1417 = vmatpush1.msra.mxu0 0.0
        %1418 = vmatprep.subr.mxu0 0.0
        %1419 = vmatpush1.msra.mxu0 0.0
        %1420 = vmatprep.subr.mxu0 0.0
        %1421 = vmatpush1.msra.mxu0 0.0
        %1422 = vmatprep.subr.mxu0 0.0
        %1423 = vmatpush1.msra.mxu0 0.0
        %1424 = vmatprep.subr.mxu0 0.0
        %1425 = vmatpush1.msra.mxu0 0.0
        %1426 = vmatprep.subr.mxu0 0.0
        %1427 = vmatpush1.msra.mxu0 0.0
        %1428 = vmatprep.subr.mxu0 0.0
        %1429 = vmatpush1.msra.mxu0 0.0
        %1430 = vmatprep.subr.mxu0 0.0
        %1431 = vmatpush1.msra.mxu0 0.0
        %1432 = vmatprep.subr.mxu0 0.0
        %1433 = vmatpush1.msra.mxu0 0.0
        %1434 = vmatprep.subr.mxu0 0.0
        %1435 = vmatpush1.msra.mxu0 0.0
        %1436 = vmatprep.subr.mxu0 0.0
        %1437 = vmatpush1.msra.mxu0 0.0
        %1438 = vmatprep.subr.mxu0 0.0
        %1439 = vmatpush1.msra.mxu0 0.0
        %1440 = vmatprep.subr.mxu0 0.0
        %1441 = vmatpush1.msra.mxu0 0.0
        %1442 = vmatprep.subr.mxu0 0.0
        %1443 = vmatpush1.msra.mxu0 0.0
        %1444 = vmatprep.subr.mxu0 0.0
        %1445 = vmatpush1.msra.mxu0 0.0
        %1446 = vmatprep.subr.mxu0 0.0
        %1447 = vmatpush1.msra.mxu0 0.0
        %1448 = vmatprep.subr.mxu0 0.0
        %1449 = vmatpush1.msra.mxu0 0.0
        %1450 = vmatprep.subr.mxu0 0.0
        %1451 = vmatpush1.msra.mxu0 0.0
        %1452 = vmatprep.subr.mxu0 0.0
        %1453 = vmatpush1.msra.mxu0 0.0
        %1454 = vmatprep.subr.mxu0 0.0
        %1455 = vmatpush1.msra.mxu0 0.0
        %1456 = vmatprep.subr.mxu0 0.0
        %1457 = vmatpush1.msra.mxu0 0.0
        %1458 = vmatprep.subr.mxu0 0.0
        %1459 = vmatpush1.msra.mxu0 0.0
        %1460 = vmatprep.subr.mxu0 0.0
        %1461 = vmatpush1.msra.mxu0 0.0
        %1462 = vmatprep.subr.mxu0 0.0
        %1463 = vmatpush1.msra.mxu0 0.0
        %1464 = vmatprep.mubr.f32.mxu0 0.0
        %1465 = vmatmul.mubr.f32.gmra.mrb[0].mxu0 %v1392
        %v1466 = vpop.f32.mrb[0].mxu0
        %v1467 = vadd.f32 0.0, %v1466
        %v1468 = vpop.f32.mrb[0].mxu0
        %v1469 = vadd.f32 0.0, %v1468
        %1470 = vdwg.mxu0
        %1471 = vmatprep.subr.mxu0 0.0
        %1472 = vmatpush1.msra.mxu0 %v1398
        %1473 = vmatprep.subr.mxu0 0.0
        %1474 = vmatpush1.msra.mxu0 0.0
        %1475 = vmatprep.subr.mxu0 0.0
        %1476 = vmatpush1.msra.mxu0 0.0
        %1477 = vmatprep.subr.mxu0 0.0
        %1478 = vmatpush1.msra.mxu0 0.0
        %1479 = vmatprep.subr.mxu0 0.0
        %1480 = vmatpush1.msra.mxu0 0.0
        %1481 = vmatprep.subr.mxu0 0.0
        %1482 = vmatpush1.msra.mxu0 0.0
        %1483 = vmatprep.subr.mxu0 0.0
        %1484 = vmatpush1.msra.mxu0 0.0
        %1485 = vmatprep.subr.mxu0 0.0
        %1486 = vmatpush1.msra.mxu0 0.0
        %1487 = vmatprep.subr.mxu0 0.0
        %1488 = vmatpush1.msra.mxu0 0.0
        %1489 = vmatprep.subr.mxu0 0.0
        %1490 = vmatpush1.msra.mxu0 0.0
        %1491 = vmatprep.subr.mxu0 0.0
        %1492 = vmatpush1.msra.mxu0 0.0
        %1493 = vmatprep.subr.mxu0 0.0
        %1494 = vmatpush1.msra.mxu0 0.0
        %1495 = vmatprep.subr.mxu0 0.0
        %1496 = vmatpush1.msra.mxu0 0.0
        %1497 = vmatprep.subr.mxu0 0.0
        %1498 = vmatpush1.msra.mxu0 0.0
        %1499 = vmatprep.subr.mxu0 0.0
        %1500 = vmatpush1.msra.mxu0 0.0
        %1501 = vmatprep.subr.mxu0 0.0
        %1502 = vmatpush1.msra.mxu0 0.0
        %1503 = vmatprep.subr.mxu0 0.0
        %1504 = vmatpush1.msra.mxu0 0.0
        %1505 = vmatprep.subr.mxu0 0.0
        %1506 = vmatpush1.msra.mxu0 0.0
        %1507 = vmatprep.subr.mxu0 0.0
        %1508 = vmatpush1.msra.mxu0 0.0
        %1509 = vmatprep.subr.mxu0 0.0
        %1510 = vmatpush1.msra.mxu0 0.0
        %1511 = vmatprep.subr.mxu0 0.0
        %1512 = vmatpush1.msra.mxu0 0.0
        %1513 = vmatprep.subr.mxu0 0.0
        %1514 = vmatpush1.msra.mxu0 0.0
        %1515 = vmatprep.subr.mxu0 0.0
        %1516 = vmatpush1.msra.mxu0 0.0
        %1517 = vmatprep.subr.mxu0 0.0
        %1518 = vmatpush1.msra.mxu0 0.0
        %1519 = vmatprep.subr.mxu0 0.0
        %1520 = vmatpush1.msra.mxu0 0.0
        %1521 = vmatprep.subr.mxu0 0.0
        %1522 = vmatpush1.msra.mxu0 0.0
        %1523 = vmatprep.subr.mxu0 0.0
        %1524 = vmatpush1.msra.mxu0 0.0
        %1525 = vmatprep.subr.mxu0 0.0
        %1526 = vmatpush1.msra.mxu0 0.0
        %1527 = vmatprep.subr.mxu0 0.0
        %1528 = vmatpush1.msra.mxu0 0.0
        %1529 = vmatprep.subr.mxu0 0.0
        %1530 = vmatpush1.msra.mxu0 0.0
        %1531 = vmatprep.subr.mxu0 0.0
        %1532 = vmatpush1.msra.mxu0 0.0
        %1533 = vmatprep.subr.mxu0 0.0
        %1534 = vmatpush1.msra.mxu0 0.0
        %1535 = vmatprep.mubr.f32.mxu0 0.0
        %1536 = vmatmul.mubr.f32.gmra.mrb[0].mxu0 %v1392
        %v1537 = vpop.f32.mrb[0].mxu0
        %v1538 = vadd.f32 0.0, %v1537
        %v1539 = vpop.f32.mrb[0].mxu0
        %1540 = vdwg.mxu0
        %v1541 = vadd.f32 %v1368, %v1467
        %v1542 = vadd.f32 %v1369, %v1469
        %v1543 = vadd.f32 %v1370, %v1538
        %s1544 = scalar_lea.vmem %s1, 64
        %v1545 = vld [vmem:[%s1544] sm:$0xff]
        %v1546 = vld [vmem:[%s168] sm:$0xff]
        %v1547 = vld [vmem:[%s168 + $0x8] sm:$0xff]
        %v1550 = vcombine.high %v1546, %v1546
        %v1551 = vcombine.high %v1547, %v1547
        %1552 = vrot.lane.b32.xlu0 %v1546, 90
        %v1553 = vpop.permute.xlu0 %1552
        %1554 = vrot.lane.b32.xlu0 %v1550, 90
        %v1555 = vpop.permute.xlu0 %1554
        %1556 = vrot.lane.b32.xlu0 %v1547, 90
        %v1557 = vpop.permute.xlu0 %1556
        %1558 = vrot.lane.b32.xlu0 %v1551, 90
        %v1559 = vpop.permute.xlu0 %1558
        %vm1560 = vcmask 736256
        %v1561 = vsel %vm1560, %v1553, %v1555
        %v1562 = vsel %vm1560, %v1555, %v1557
        %v1563 = vsel %vm1560, %v1557, %v1559
        %v1565 = vsel %vm178, %v1545, 0
        %v1567 = vsel %vm182, %v1561, 0
        %v1569 = vsel %vm182, %v1562, 0
        %v1571 = vsel %vm182, %v1563, 0
        %1573 = vmatprep.subr.mxu0 %v1569
        %1574 = vmatpush1.msra.mxu0 %v1567
        %1575 = vmatprep.subr.mxu0 0.0
        %1576 = vmatpush1.msra.mxu0 0.0
        %1577 = vmatprep.subr.mxu0 0.0
        %1578 = vmatpush1.msra.mxu0 0.0
        %1579 = vmatprep.subr.mxu0 0.0
        %1580 = vmatpush1.msra.mxu0 0.0
        %1581 = vmatprep.subr.mxu0 0.0
        %1582 = vmatpush1.msra.mxu0 0.0
        %1583 = vmatprep.subr.mxu0 0.0
        %1584 = vmatpush1.msra.mxu0 0.0
        %1585 = vmatprep.subr.mxu0 0.0
        %1586 = vmatpush1.msra.mxu0 0.0
        %1587 = vmatprep.subr.mxu0 0.0
        %1588 = vmatpush1.msra.mxu0 0.0
        %1589 = vmatprep.subr.mxu0 0.0
        %1590 = vmatpush1.msra.mxu0 0.0
        %1591 = vmatprep.subr.mxu0 0.0
        %1592 = vmatpush1.msra.mxu0 0.0
        %1593 = vmatprep.subr.mxu0 0.0
        %1594 = vmatpush1.msra.mxu0 0.0
        %1595 = vmatprep.subr.mxu0 0.0
        %1596 = vmatpush1.msra.mxu0 0.0
        %1597 = vmatprep.subr.mxu0 0.0
        %1598 = vmatpush1.msra.mxu0 0.0
        %1599 = vmatprep.subr.mxu0 0.0
        %1600 = vmatpush1.msra.mxu0 0.0
        %1601 = vmatprep.subr.mxu0 0.0
        %1602 = vmatpush1.msra.mxu0 0.0
        %1603 = vmatprep.subr.mxu0 0.0
        %1604 = vmatpush1.msra.mxu0 0.0
        %1605 = vmatprep.subr.mxu0 0.0
        %1606 = vmatpush1.msra.mxu0 0.0
        %1607 = vmatprep.subr.mxu0 0.0
        %1608 = vmatpush1.msra.mxu0 0.0
        %1609 = vmatprep.subr.mxu0 0.0
        %1610 = vmatpush1.msra.mxu0 0.0
        %1611 = vmatprep.subr.mxu0 0.0
        %1612 = vmatpush1.msra.mxu0 0.0
        %1613 = vmatprep.subr.mxu0 0.0
        %1614 = vmatpush1.msra.mxu0 0.0
        %1615 = vmatprep.subr.mxu0 0.0
        %1616 = vmatpush1.msra.mxu0 0.0
        %1617 = vmatprep.subr.mxu0 0.0
        %1618 = vmatpush1.msra.mxu0 0.0
        %1619 = vmatprep.subr.mxu0 0.0
        %1620 = vmatpush1.msra.mxu0 0.0
        %1621 = vmatprep.subr.mxu0 0.0
        %1622 = vmatpush1.msra.mxu0 0.0
        %1623 = vmatprep.subr.mxu0 0.0
        %1624 = vmatpush1.msra.mxu0 0.0
        %1625 = vmatprep.subr.mxu0 0.0
        %1626 = vmatpush1.msra.mxu0 0.0
        %1627 = vmatprep.subr.mxu0 0.0
        %1628 = vmatpush1.msra.mxu0 0.0
        %1629 = vmatprep.subr.mxu0 0.0
        %1630 = vmatpush1.msra.mxu0 0.0
        %1631 = vmatprep.subr.mxu0 0.0
        %1632 = vmatpush1.msra.mxu0 0.0
        %1633 = vmatprep.subr.mxu0 0.0
        %1634 = vmatpush1.msra.mxu0 0.0
        %1635 = vmatprep.subr.mxu0 0.0
        %1636 = vmatpush1.msra.mxu0 0.0
        %1637 = vmatprep.mubr.f32.mxu0 0.0
        %1638 = vmatmul.mubr.f32.gmra.mrb[0].mxu0 %v1565
        %v1639 = vpop.f32.mrb[0].mxu0
        %v1640 = vadd.f32 0.0, %v1639
        %v1641 = vpop.f32.mrb[0].mxu0
        %v1642 = vadd.f32 0.0, %v1641
        %1643 = vdwg.mxu0
        %1644 = vmatprep.subr.mxu0 0.0
        %1645 = vmatpush1.msra.mxu0 %v1571
        %1646 = vmatprep.subr.mxu0 0.0
        %1647 = vmatpush1.msra.mxu0 0.0
        %1648 = vmatprep.subr.mxu0 0.0
        %1649 = vmatpush1.msra.mxu0 0.0
        %1650 = vmatprep.subr.mxu0 0.0
        %1651 = vmatpush1.msra.mxu0 0.0
        %1652 = vmatprep.subr.mxu0 0.0
        %1653 = vmatpush1.msra.mxu0 0.0
        %1654 = vmatprep.subr.mxu0 0.0
        %1655 = vmatpush1.msra.mxu0 0.0
        %1656 = vmatprep.subr.mxu0 0.0
        %1657 = vmatpush1.msra.mxu0 0.0
        %1658 = vmatprep.subr.mxu0 0.0
        %1659 = vmatpush1.msra.mxu0 0.0
        %1660 = vmatprep.subr.mxu0 0.0
        %1661 = vmatpush1.msra.mxu0 0.0
        %1662 = vmatprep.subr.mxu0 0.0
        %1663 = vmatpush1.msra.mxu0 0.0
        %1664 = vmatprep.subr.mxu0 0.0
        %1665 = vmatpush1.msra.mxu0 0.0
        %1666 = vmatprep.subr.mxu0 0.0
        %1667 = vmatpush1.msra.mxu0 0.0
        %1668 = vmatprep.subr.mxu0 0.0
        %1669 = vmatpush1.msra.mxu0 0.0
        %1670 = vmatprep.subr.mxu0 0.0
        %1671 = vmatpush1.msra.mxu0 0.0
        %1672 = vmatprep.subr.mxu0 0.0
        %1673 = vmatpush1.msra.mxu0 0.0
        %1674 = vmatprep.subr.mxu0 0.0
        %1675 = vmatpush1.msra.mxu0 0.0
        %1676 = vmatprep.subr.mxu0 0.0
        %1677 = vmatpush1.msra.mxu0 0.0
        %1678 = vmatprep.subr.mxu0 0.0
        %1679 = vmatpush1.msra.mxu0 0.0
        %1680 = vmatprep.subr.mxu0 0.0
        %1681 = vmatpush1.msra.mxu0 0.0
        %1682 = vmatprep.subr.mxu0 0.0
        %1683 = vmatpush1.msra.mxu0 0.0
        %1684 = vmatprep.subr.mxu0 0.0
        %1685 = vmatpush1.msra.mxu0 0.0
        %1686 = vmatprep.subr.mxu0 0.0
        %1687 = vmatpush1.msra.mxu0 0.0
        %1688 = vmatprep.subr.mxu0 0.0
        %1689 = vmatpush1.msra.mxu0 0.0
        %1690 = vmatprep.subr.mxu0 0.0
        %1691 = vmatpush1.msra.mxu0 0.0
        %1692 = vmatprep.subr.mxu0 0.0
        %1693 = vmatpush1.msra.mxu0 0.0
        %1694 = vmatprep.subr.mxu0 0.0
        %1695 = vmatpush1.msra.mxu0 0.0
        %1696 = vmatprep.subr.mxu0 0.0
        %1697 = vmatpush1.msra.mxu0 0.0
        %1698 = vmatprep.subr.mxu0 0.0
        %1699 = vmatpush1.msra.mxu0 0.0
        %1700 = vmatprep.subr.mxu0 0.0
        %1701 = vmatpush1.msra.mxu0 0.0
        %1702 = vmatprep.subr.mxu0 0.0
        %1703 = vmatpush1.msra.mxu0 0.0
        %1704 = vmatprep.subr.mxu0 0.0
        %1705 = vmatpush1.msra.mxu0 0.0
        %1706 = vmatprep.subr.mxu0 0.0
        %1707 = vmatpush1.msra.mxu0 0.0
        %1708 = vmatprep.mubr.f32.mxu0 0.0
        %1709 = vmatmul.mubr.f32.gmra.mrb[0].mxu0 %v1565
        %v1710 = vpop.f32.mrb[0].mxu0
        %v1711 = vadd.f32 0.0, %v1710
        %v1712 = vpop.f32.mrb[0].mxu0
        %1713 = vdwg.mxu0
        %v1714 = vadd.f32 %v1541, %v1640
        %v1715 = vadd.f32 %v1542, %v1642
        %v1716 = vadd.f32 %v1543, %v1711
        %1717 = vst [vmem:[%s163] sm:$0xff] %v1714
        %1718 = vst [vmem:[%s163 + $0x8] sm:$0xff] %v1715
        %1719 = vst [vmem:[%s163 + $0x10] sm:$0xff] %v1716
        %s1720 = sand.u32 %s93, 1
        %s1721 = scalar_lea.sflag [#allocation3], %s1720
        %s1722 = sand.u32 %s93, 1
        %s1723 = smul.addr %s1722, 24
        %s1724 = scalar_lea.vmem [#allocation2], %s1723
        // Predicated region
        $region33: #{tpu_custom_call.1} parent=31 // pred_check
          %p1725 = pneg %p103
        $region34: #{tpu_custom_call.1} parent=31 // pred_check_branch
          %1727 = sbr.rel (%p1725) target = $region36
        $region35: #{tpu_custom_call.1} parent=31 // pred_region
          %s1729 = ssub.s32 384, 384
          %1730 = vsyncadd %s1721, %s1729
          %s1731 = smul.addr %s17, 3
          %s1732 = smul.addr %s1731, 128
          %s1733 = scalar_lea.hbm %s3, %s1732
          %s1735 = sshll.u32 %s1724, 4
          %s1736 = int_to_ptr.vmem [resolvable:$true] %s1735
          %1738 = dma.vmem_to_hbm [thread:$0]  %s1736, 384, %s1733, %s1721
        $region36: #{tpu_custom_call.1} parent=31 // pred_fallthru
          _
      $region32: #{tpu_custom_call.1} parent=5 // pred_fallthru
        _
      %p1739 = scmp.le.s32.totalorder 2, %s12
      // Predicated region
      $region37: #{tpu_custom_call.1} parent=5 // pred_check
        %p1740 = pneg %p1739
      $region38: #{tpu_custom_call.1} parent=5 // pred_check_branch
        %1742 = sbr.rel (%p1740) target = $region40
      $region39: #{tpu_custom_call.1} parent=5 // pred_region
        %s1743 = ssub.s32 %s12, 2
        // Predicated region
        $region41: #{tpu_custom_call.1} parent=39 // pred_check
          %p1744 = pneg %p109
        $region42: #{tpu_custom_call.1} parent=39 // pred_check_branch
          %1746 = sbr.rel (%p1744) target = $region44
        $region43: #{tpu_custom_call.1} parent=39 // pred_region
          %s1747 = sand.u32 %s94, 1
          %s1748 = scalar_lea.sflag [#allocation3], %s1747
          %s1749 = sand.u32 %s94, 1
          %s1750 = smul.addr %s1749, 24
          %s1751 = scalar_lea.vmem [#allocation2], %s1750
          %1752 = dma.done %s1748, 384
        $region44: #{tpu_custom_call.1} parent=39 // pred_fallthru
          _
      $region40: #{tpu_custom_call.1} parent=5 // pred_fallthru
        _
    $region6: #{tpu_custom_call.1} parent=1 // loop_footer
      %s16 = sadd.s32 1, %s12
    $region7: #{tpu_custom_call.1} parent=1 // loop_footer_branch
      %11 = sbr.rel target = $region3
    $region8: #{tpu_custom_call.1} parent=1 // loop_exit
      _
    %1753 = vsyncpa [#allocation3], 1
    %s1754 = scalar_lea.sflag [#allocation3], 1
    %1755 = vsyncpa %s1754, 1

</llo_original>
